<compile_context>
chip_gen: v7x
topology: tpu7x:2x2x1
jax: 0.10.0
libtpu: 0.0.40
codegen_flags: <defaults>
</compile_context>

<pallas_src>
import math
from functools import partial

import jax
import jax.numpy as jnp
from jax.experimental import pallas as pl
from jax.experimental.pallas import tpu as pltpu

BN_EPS = 1e-5  # PyTorch BatchNorm2d default


# ------------------------------- Pallas kernel -------------------------------
def enc_block_kernel(x_ref, w_ref, scale_ref, shift_ref, out_ref, *,
                     KH, KW, cin, cout, pool):
    """Fused Conv2d(stride=1) + MaxPool2d(2,2) + BatchNorm2d(eval) + ReLU.

    One grid step == one batch element.  Lane axis = fused (W, Cout).

    x_ref:     (1, Cin, Hp, Wp*Cout)  zero-padded input, channel value
                                      replicated across its Cout lane group
    w_ref:     (KH*KW*Cin, Wc*Cout)   conv taps, tiled across the W lane groups
    scale_ref: (1, Wc*Cout)           folded BN scale (ones if bn disabled)
    shift_ref: (1, Wc*Cout)           folded BN shift + conv bias
    out_ref:   (1, Hc, Wc*Cout)       conv-resolution output block (the wrapper
                                      extracts even rows/cols when pooling)
    """
    _, Hc, WcC = out_ref.shape

    # ---- convolution: unrolled taps; each tap is one full-lane VPU MAC on a
    # (Hc, Wc*Cout) slab.  Cin=4 / Cout=8 is far below MXU tile size; for
    # Cin/Cout >= ~32 switch this loop to an im2col jnp.dot on the (idle) MXU.
    acc = jnp.zeros((Hc, WcC), jnp.float32)
    for kh in range(KH):
        for ci in range(cin):
            rows = x_ref[0, ci, kh:kh + Hc, :]                 # (Hc, Wp*Cout)
            for kw in range(KW):
                t = (kh * KW + kw) * cin + ci
                patch = rows[:, kw * cout:kw * cout + WcC]     # (Hc, Wc*Cout)
                acc = acc + patch * w_ref[t:t + 1, :]          # pre-tiled tap

    scale = scale_ref[...]                                     # (1, Wc*Cout)
    shift = shift_ref[...]                                     # bias folded in

    if pool:
        # MaxPool2d(2,2): pairwise max with the next conv row (sublane dir)
        # and with the next Cout-wide lane group (lane dir).  Valid pooled
        # values land at even rows / even W-groups; everything stays full-lane
        # and is written with ONE store.  The even-row / even-column
        # extraction happens in the wrapper (cheap XLA slice on a tiny array).
        mh = jnp.maximum(acc[:Hc - 1, :], acc[1:, :])          # (Hc-1, WcC)
        mw = jnp.maximum(mh[:, :WcC - cout], mh[:, cout:])     # (Hc-1, WcC-cout)
        y = jnp.maximum(mw * scale[:, :WcC - cout] + shift[:, :WcC - cout], 0.0)
        out_ref[0, :Hc - 1, :WcC - cout] = y                   # single store
    else:
        out_ref[0, :, :] = jnp.maximum(acc * scale + shift, 0.0)


# ------------------------------ pallas_call glue ------------------------------
@partial(jax.jit, static_argnames=("stride", "padding", "pool", "bn"))
def enc_block_forward(x_nchw, params, *, stride=1, padding=1, pool=True,
                      bn=True):
    """PyTorch EncBlock.forward (inference): conv -> pool -> bn -> relu."""
    if stride != 1:
        # TODO(synk): stride > 1 conv path is not implemented in the Pallas
        # kernel (strided lane/sublane gathers); only stride=1 is supported.
        raise NotImplementedError("EncBlock Pallas kernel supports stride=1 only")

    B, Cin, H, W = x_nchw.shape
    w = params["w"]                                   # (Cout, Cin, KH, KW)
    Cout, _, KH, KW = w.shape

    Hp, Wp = H + 2 * padding, W + 2 * padding
    Hc, Wc = Hp - KH + 1, Wp - KW + 1
    WpC, WcC = Wp * Cout, Wc * Cout
    T = KH * KW * Cin

    # --- input: zero-pad spatially and replicate each channel value across a
    # Cout-wide lane group so the in-kernel lane index is (w*Cout + co).
    # Cheap XLA ops on a tiny tensor; for large activations fold the padding
    # into the kernel (masked edge taps) to avoid the extra HBM round trip.
    x_pad = jnp.pad(x_nchw.astype(jnp.float32),
                    ((0, 0), (0, 0), (padding, padding), (padding, padding)))
    x_rep = jnp.broadcast_to(x_pad[..., None],
                             (B, Cin, Hp, Wp, Cout)).reshape(B, Cin, Hp, WpC)

    # --- weights: one row per (kh, kw, ci) tap, tiled across the W lane groups.
    w_tiled = jnp.tile(jnp.transpose(w, (2, 3, 1, 0)).reshape(T, Cout), (1, Wc))

    # --- fold conv bias + eval-mode BatchNorm into one per-channel affine
    # (bias commutes with max-pool, so it is applied post-pool in the kernel).
    bias = params["b"]
    if bn:
        scale_c = params["gamma"] * jax.lax.rsqrt(params["running_var"] + BN_EPS)
        shift_c = params["beta"] + (bias - params["running_mean"]) * scale_c
    else:
        scale_c = jnp.ones((Cout,), jnp.float32)
        shift_c = bias
    scale = jnp.tile(scale_c, Wc).reshape(1, WcC)
    shift = jnp.tile(shift_c, Wc).reshape(1, WcC)

    out_full = pl.pallas_call(
        partial(enc_block_kernel, KH=KH, KW=KW, cin=Cin, cout=Cout, pool=pool),
        out_shape=jax.ShapeDtypeStruct((B, Hc, WcC), jnp.float32),
        grid=(B,),                       # one program per batch element
        in_specs=[
            pl.BlockSpec((1, Cin, Hp, WpC), lambda b: (b, 0, 0, 0)),
            pl.BlockSpec((T, WcC), lambda b: (0, 0)),
            pl.BlockSpec((1, WcC), lambda b: (0, 0)),
            pl.BlockSpec((1, WcC), lambda b: (0, 0)),
        ],
        out_specs=pl.BlockSpec((1, Hc, WcC), lambda b: (b, 0, 0)),
        compiler_params=pltpu.CompilerParams(
            dimension_semantics=("parallel",)),   # use both TCs on v7x
        # NOTE: everything here is << 1 MiB of VMEM; for real shapes, re-derive
        # block sizes per generation (v7x has 64 MiB physical VMEM) and set
        # vmem_limit_bytes explicitly.
    )(x_rep, w_tiled, scale, shift)

    # --- layout plumbing back to NCHW (+ even-row/col extraction for pooling);
    # tiny XLA ops, no compute.
    y = out_full.reshape(B, Hc, Wc, Cout)
    if pool:
        Hf, Wf = Hc // 2, Wc // 2
        y = y[:, :2 * Hf:2, :2 * Wf:2, :]
    return jnp.transpose(y, (0, 3, 1, 2))


# --------------------------------- parameters ---------------------------------
def init_params(key, cin, cout, k):
    ks = jax.random.split(key, 6)
    bound = 1.0 / math.sqrt(cin * k * k)
    return dict(
        w=jax.random.uniform(ks[0], (cout, cin, k, k), jnp.float32, -bound, bound),
        b=jax.random.uniform(ks[1], (cout,), jnp.float32, -bound, bound),
        gamma=1.0 + 0.1 * jax.random.normal(ks[2], (cout,), jnp.float32),
        beta=0.1 * jax.random.normal(ks[3], (cout,), jnp.float32),
        running_mean=0.1 * jax.random.normal(ks[4], (cout,), jnp.float32),
        running_var=1.0 + 0.1 * jax.random.uniform(ks[5], (cout,), jnp.float32),
    )


# ------------------------------ pure-JAX reference -----------------------------
def ref_enc_block(x, p, *, stride, padding, pool, bn):
    y = jax.lax.conv_general_dilated(
        x, p["w"], window_strides=(stride, stride),
        padding=[(padding, padding), (padding, padding)],
        dimension_numbers=("NCHW", "OIHW", "NCHW"),
        precision=jax.lax.Precision.HIGHEST)
    y = y + p["b"][None, :, None, None]
    if pool:
        y = jax.lax.reduce_window(y, -jnp.inf, jax.lax.max,
                                  (1, 1, 2, 2), (1, 1, 2, 2), "VALID")
    if bn:
        inv = jax.lax.rsqrt(p["running_var"] + BN_EPS)
        y = ((y - p["running_mean"][None, :, None, None])
             * (p["gamma"] * inv)[None, :, None, None]
             + p["beta"][None, :, None, None])
    return jnp.maximum(y, 0.0)


# ------------------------------------ main -------------------------------------
if __name__ == "__main__":
    key = jax.random.PRNGKey(0)
    kx, kp = jax.random.split(key)
    B, Cin, H, W = 2, 4, 16, 16
    Cout, K = 8, 3
    x = jax.random.normal(kx, (B, Cin, H, W), jnp.float32)
    params = init_params(kp, Cin, Cout, K)

    # config 1: conv(3x3, s=1, p=1) + maxpool(2,2) + batchnorm + relu
    out1 = jax.block_until_ready(
        enc_block_forward(x, params, stride=1, padding=1, pool=True, bn=True))
    ref1 = jax.block_until_ready(
        ref_enc_block(x, params, stride=1, padding=1, pool=True, bn=True))
    assert out1.shape == (B, Cout, H // 2, W // 2), out1.shape
    assert jnp.allclose(out1, ref1, rtol=1e-4, atol=1e-4), (
        float(jnp.max(jnp.abs(out1 - ref1))))

    # config 2: conv(3x3, s=1, p=0), no pool, no bn, relu
    out2 = jax.block_until_ready(
        enc_block_forward(x, params, stride=1, padding=0, pool=False, bn=False))
    ref2 = jax.block_until_ready(
        ref_enc_block(x, params, stride=1, padding=0, pool=False, bn=False))
    assert out2.shape == (B, Cout, H - K + 1, W - K + 1), out2.shape
    assert jnp.allclose(out2, ref2, rtol=1e-4, atol=1e-4), (
        float(jnp.max(jnp.abs(out2 - ref2))))

    print("KERNEL_OK")
</pallas_src>

<mosaic_0001>
module attributes {stable_mosaic.version = 11 : i64} {
  func.func @enc_block_kernel(%arg0: i32, %arg1: memref<1x4x18x144xf32, #tpu.memory_space<vmem>>, %arg2: memref<36x128xf32, #tpu.memory_space<vmem>>, %arg3: memref<1x128xf32, #tpu.memory_space<vmem>>, %arg4: memref<1x128xf32, #tpu.memory_space<vmem>>, %arg5: memref<1x16x128xf32, #tpu.memory_space<vmem>>) attributes {dimension_semantics = [#tpu.dimension_semantics<parallel>], iteration_bounds = array<i64: 2>, scalar_prefetch = 0 : i64, scratch_operands = 0 : i64, tpu.core_type = #tpu.core_type<tc>, window_params = [{transform_indices = @transform_0, window_bounds = array<i64: 1, 4, 18, 144>}, {pipeline_mode = #tpu.pipeline_mode<synchronous>, transform_indices = @transform_1, window_bounds = array<i64: 36, 128>}, {pipeline_mode = #tpu.pipeline_mode<synchronous>, transform_indices = @transform_2, window_bounds = array<i64: 1, 128>}, {pipeline_mode = #tpu.pipeline_mode<synchronous>, transform_indices = @transform_3, window_bounds = array<i64: 1, 128>}, {transform_indices = @transform_4, window_bounds = array<i64: 1, 16, 128>}]} {
    %cst = arith.constant 0.000000e+00 : f32
    %0 = vector.broadcast %cst : f32 to vector<16x128xf32>
    %c0 = arith.constant 0 : index
    %c0_0 = arith.constant 0 : index
    %c0_1 = arith.constant 0 : index
    %c0_2 = arith.constant 0 : index
    %1 = vector.load %arg1[%c0, %c0_0, %c0_1, %c0_2] : memref<1x4x18x144xf32, #tpu.memory_space<vmem>>, vector<1x1x16x144xf32>
    %2 = vector.shape_cast %1 : vector<1x1x16x144xf32> to vector<16x144xf32>
    %3 = vector.extract_strided_slice %2 {offsets = [0, 0], sizes = [16, 128], strides = [1, 1]} : vector<16x144xf32> to vector<16x128xf32>
    %c0_3 = arith.constant 0 : index
    %c0_4 = arith.constant 0 : index
    %4 = vector.load %arg2[%c0_3, %c0_4] : memref<36x128xf32, #tpu.memory_space<vmem>>, vector<1x128xf32>
    %5 = vector.broadcast %4 : vector<1x128xf32> to vector<16x128xf32>
    %6 = arith.mulf %3, %5 : vector<16x128xf32>
    %7 = arith.addf %0, %6 : vector<16x128xf32>
    %8 = vector.extract_strided_slice %2 {offsets = [0, 8], sizes = [16, 128], strides = [1, 1]} : vector<16x144xf32> to vector<16x128xf32>
    %c4 = arith.constant 4 : index
    %c0_5 = arith.constant 0 : index
    %9 = vector.load %arg2[%c4, %c0_5] : memref<36x128xf32, #tpu.memory_space<vmem>>, vector<1x128xf32>
    %10 = vector.broadcast %9 : vector<1x128xf32> to vector<16x128xf32>
    %11 = arith.mulf %8, %10 : vector<16x128xf32>
    %12 = arith.addf %7, %11 : vector<16x128xf32>
    %13 = vector.extract_strided_slice %2 {offsets = [0, 16], sizes = [16, 128], strides = [1, 1]} : vector<16x144xf32> to vector<16x128xf32>
    %c8 = arith.constant 8 : index
    %c0_6 = arith.constant 0 : index
    %14 = vector.load %arg2[%c8, %c0_6] : memref<36x128xf32, #tpu.memory_space<vmem>>, vector<1x128xf32>
    %15 = vector.broadcast %14 : vector<1x128xf32> to vector<16x128xf32>
    %16 = arith.mulf %13, %15 : vector<16x128xf32>
    %17 = arith.addf %12, %16 : vector<16x128xf32>
    %c0_7 = arith.constant 0 : index
    %c1 = arith.constant 1 : index
    %c0_8 = arith.constant 0 : index
    %c0_9 = arith.constant 0 : index
    %18 = vector.load %arg1[%c0_7, %c1, %c0_8, %c0_9] : memref<1x4x18x144xf32, #tpu.memory_space<vmem>>, vector<1x1x16x144xf32>
    %19 = vector.shape_cast %18 : vector<1x1x16x144xf32> to vector<16x144xf32>
    %20 = vector.extract_strided_slice %19 {offsets = [0, 0], sizes = [16, 128], strides = [1, 1]} : vector<16x144xf32> to vector<16x128xf32>
    %c1_10 = arith.constant 1 : index
    %c0_11 = arith.constant 0 : index
    %21 = vector.load %arg2[%c1_10, %c0_11] : memref<36x128xf32, #tpu.memory_space<vmem>>, vector<1x128xf32>
    %22 = vector.broadcast %21 : vector<1x128xf32> to vector<16x128xf32>
    %23 = arith.mulf %20, %22 : vector<16x128xf32>
    %24 = arith.addf %17, %23 : vector<16x128xf32>
    %25 = vector.extract_strided_slice %19 {offsets = [0, 8], sizes = [16, 128], strides = [1, 1]} : vector<16x144xf32> to vector<16x128xf32>
    %c5 = arith.constant 5 : index
    %c0_12 = arith.constant 0 : index
    %26 = vector.load %arg2[%c5, %c0_12] : memref<36x128xf32, #tpu.memory_space<vmem>>, vector<1x128xf32>
    %27 = vector.broadcast %26 : vector<1x128xf32> to vector<16x128xf32>
    %28 = arith.mulf %25, %27 : vector<16x128xf32>
    %29 = arith.addf %24, %28 : vector<16x128xf32>
    %30 = vector.extract_strided_slice %19 {offsets = [0, 16], sizes = [16, 128], strides = [1, 1]} : vector<16x144xf32> to vector<16x128xf32>
    %c9 = arith.constant 9 : index
    %c0_13 = arith.constant 0 : index
    %31 = vector.load %arg2[%c9, %c0_13] : memref<36x128xf32, #tpu.memory_space<vmem>>, vector<1x128xf32>
    %32 = vector.broadcast %31 : vector<1x128xf32> to vector<16x128xf32>
    %33 = arith.mulf %30, %32 : vector<16x128xf32>
    %34 = arith.addf %29, %33 : vector<16x128xf32>
    %c0_14 = arith.constant 0 : index
    %c2 = arith.constant 2 : index
    %c0_15 = arith.constant 0 : index
    %c0_16 = arith.constant 0 : index
    %35 = vector.load %arg1[%c0_14, %c2, %c0_15, %c0_16] : memref<1x4x18x144xf32, #tpu.memory_space<vmem>>, vector<1x1x16x144xf32>
    %36 = vector.shape_cast %35 : vector<1x1x16x144xf32> to vector<16x144xf32>
    %37 = vector.extract_strided_slice %36 {offsets = [0, 0], sizes = [16, 128], strides = [1, 1]} : vector<16x144xf32> to vector<16x128xf32>
    %c2_17 = arith.constant 2 : index
    %c0_18 = arith.constant 0 : index
    %38 = vector.load %arg2[%c2_17, %c0_18] : memref<36x128xf32, #tpu.memory_space<vmem>>, vector<1x128xf32>
    %39 = vector.broadcast %38 : vector<1x128xf32> to vector<16x128xf32>
    %40 = arith.mulf %37, %39 : vector<16x128xf32>
    %41 = arith.addf %34, %40 : vector<16x128xf32>
    %42 = vector.extract_strided_slice %36 {offsets = [0, 8], sizes = [16, 128], strides = [1, 1]} : vector<16x144xf32> to vector<16x128xf32>
    %c6 = arith.constant 6 : index
    %c0_19 = arith.constant 0 : index
    %43 = vector.load %arg2[%c6, %c0_19] : memref<36x128xf32, #tpu.memory_space<vmem>>, vector<1x128xf32>
    %44 = vector.broadcast %43 : vector<1x128xf32> to vector<16x128xf32>
    %45 = arith.mulf %42, %44 : vector<16x128xf32>
    %46 = arith.addf %41, %45 : vector<16x128xf32>
    %47 = vector.extract_strided_slice %36 {offsets = [0, 16], sizes = [16, 128], strides = [1, 1]} : vector<16x144xf32> to vector<16x128xf32>
    %c10 = arith.constant 10 : index
    %c0_20 = arith.constant 0 : index
    %48 = vector.load %arg2[%c10, %c0_20] : memref<36x128xf32, #tpu.memory_space<vmem>>, vector<1x128xf32>
    %49 = vector.broadcast %48 : vector<1x128xf32> to vector<16x128xf32>
    %50 = arith.mulf %47, %49 : vector<16x128xf32>
    %51 = arith.addf %46, %50 : vector<16x128xf32>
    %c0_21 = arith.constant 0 : index
    %c3 = arith.constant 3 : index
    %c0_22 = arith.constant 0 : index
    %c0_23 = arith.constant 0 : index
    %52 = vector.load %arg1[%c0_21, %c3, %c0_22, %c0_23] : memref<1x4x18x144xf32, #tpu.memory_space<vmem>>, vector<1x1x16x144xf32>
    %53 = vector.shape_cast %52 : vector<1x1x16x144xf32> to vector<16x144xf32>
    %54 = vector.extract_strided_slice %53 {offsets = [0, 0], sizes = [16, 128], strides = [1, 1]} : vector<16x144xf32> to vector<16x128xf32>
    %c3_24 = arith.constant 3 : index
    %c0_25 = arith.constant 0 : index
    %55 = vector.load %arg2[%c3_24, %c0_25] : memref<36x128xf32, #tpu.memory_space<vmem>>, vector<1x128xf32>
    %56 = vector.broadcast %55 : vector<1x128xf32> to vector<16x128xf32>
    %57 = arith.mulf %54, %56 : vector<16x128xf32>
    %58 = arith.addf %51, %57 : vector<16x128xf32>
    %59 = vector.extract_strided_slice %53 {offsets = [0, 8], sizes = [16, 128], strides = [1, 1]} : vector<16x144xf32> to vector<16x128xf32>
    %c7 = arith.constant 7 : index
    %c0_26 = arith.constant 0 : index
    %60 = vector.load %arg2[%c7, %c0_26] : memref<36x128xf32, #tpu.memory_space<vmem>>, vector<1x128xf32>
    %61 = vector.broadcast %60 : vector<1x128xf32> to vector<16x128xf32>
    %62 = arith.mulf %59, %61 : vector<16x128xf32>
    %63 = arith.addf %58, %62 : vector<16x128xf32>
    %64 = vector.extract_strided_slice %53 {offsets = [0, 16], sizes = [16, 128], strides = [1, 1]} : vector<16x144xf32> to vector<16x128xf32>
    %c11 = arith.constant 11 : index
    %c0_27 = arith.constant 0 : index
    %65 = vector.load %arg2[%c11, %c0_27] : memref<36x128xf32, #tpu.memory_space<vmem>>, vector<1x128xf32>
    %66 = vector.broadcast %65 : vector<1x128xf32> to vector<16x128xf32>
    %67 = arith.mulf %64, %66 : vector<16x128xf32>
    %68 = arith.addf %63, %67 : vector<16x128xf32>
    %c0_28 = arith.constant 0 : index
    %c0_29 = arith.constant 0 : index
    %c1_30 = arith.constant 1 : index
    %c0_31 = arith.constant 0 : index
    %69 = vector.load %arg1[%c0_28, %c0_29, %c1_30, %c0_31] : memref<1x4x18x144xf32, #tpu.memory_space<vmem>>, vector<1x1x16x144xf32>
    %70 = vector.shape_cast %69 : vector<1x1x16x144xf32> to vector<16x144xf32>
    %71 = vector.extract_strided_slice %70 {offsets = [0, 0], sizes = [16, 128], strides = [1, 1]} : vector<16x144xf32> to vector<16x128xf32>
    %c12 = arith.constant 12 : index
    %c0_32 = arith.constant 0 : index
    %72 = vector.load %arg2[%c12, %c0_32] : memref<36x128xf32, #tpu.memory_space<vmem>>, vector<1x128xf32>
    %73 = vector.broadcast %72 : vector<1x128xf32> to vector<16x128xf32>
    %74 = arith.mulf %71, %73 : vector<16x128xf32>
    %75 = arith.addf %68, %74 : vector<16x128xf32>
    %76 = vector.extract_strided_slice %70 {offsets = [0, 8], sizes = [16, 128], strides = [1, 1]} : vector<16x144xf32> to vector<16x128xf32>
    %c16 = arith.constant 16 : index
    %c0_33 = arith.constant 0 : index
    %77 = vector.load %arg2[%c16, %c0_33] : memref<36x128xf32, #tpu.memory_space<vmem>>, vector<1x128xf32>
    %78 = vector.broadcast %77 : vector<1x128xf32> to vector<16x128xf32>
    %79 = arith.mulf %76, %78 : vector<16x128xf32>
    %80 = arith.addf %75, %79 : vector<16x128xf32>
    %81 = vector.extract_strided_slice %70 {offsets = [0, 16], sizes = [16, 128], strides = [1, 1]} : vector<16x144xf32> to vector<16x128xf32>
    %c20 = arith.constant 20 : index
    %c0_34 = arith.constant 0 : index
    %82 = vector.load %arg2[%c20, %c0_34] : memref<36x128xf32, #tpu.memory_space<vmem>>, vector<1x128xf32>
    %83 = vector.broadcast %82 : vector<1x128xf32> to vector<16x128xf32>
    %84 = arith.mulf %81, %83 : vector<16x128xf32>
    %85 = arith.addf %80, %84 : vector<16x128xf32>
    %c0_35 = arith.constant 0 : index
    %c1_36 = arith.constant 1 : index
    %c1_37 = arith.constant 1 : index
    %c0_38 = arith.constant 0 : index
    %86 = vector.load %arg1[%c0_35, %c1_36, %c1_37, %c0_38] : memref<1x4x18x144xf32, #tpu.memory_space<vmem>>, vector<1x1x16x144xf32>
    %87 = vector.shape_cast %86 : vector<1x1x16x144xf32> to vector<16x144xf32>
    %88 = vector.extract_strided_slice %87 {offsets = [0, 0], sizes = [16, 128], strides = [1, 1]} : vector<16x144xf32> to vector<16x128xf32>
    %c13 = arith.constant 13 : index
    %c0_39 = arith.constant 0 : index
    %89 = vector.load %arg2[%c13, %c0_39] : memref<36x128xf32, #tpu.memory_space<vmem>>, vector<1x128xf32>
    %90 = vector.broadcast %89 : vector<1x128xf32> to vector<16x128xf32>
    %91 = arith.mulf %88, %90 : vector<16x128xf32>
    %92 = arith.addf %85, %91 : vector<16x128xf32>
    %93 = vector.extract_strided_slice %87 {offsets = [0, 8], sizes = [16, 128], strides = [1, 1]} : vector<16x144xf32> to vector<16x128xf32>
    %c17 = arith.constant 17 : index
    %c0_40 = arith.constant 0 : index
    %94 = vector.load %arg2[%c17, %c0_40] : memref<36x128xf32, #tpu.memory_space<vmem>>, vector<1x128xf32>
    %95 = vector.broadcast %94 : vector<1x128xf32> to vector<16x128xf32>
    %96 = arith.mulf %93, %95 : vector<16x128xf32>
    %97 = arith.addf %92, %96 : vector<16x128xf32>
    %98 = vector.extract_strided_slice %87 {offsets = [0, 16], sizes = [16, 128], strides = [1, 1]} : vector<16x144xf32> to vector<16x128xf32>
    %c21 = arith.constant 21 : index
    %c0_41 = arith.constant 0 : index
    %99 = vector.load %arg2[%c21, %c0_41] : memref<36x128xf32, #tpu.memory_space<vmem>>, vector<1x128xf32>
    %100 = vector.broadcast %99 : vector<1x128xf32> to vector<16x128xf32>
    %101 = arith.mulf %98, %100 : vector<16x128xf32>
    %102 = arith.addf %97, %101 : vector<16x128xf32>
    %c0_42 = arith.constant 0 : index
    %c2_43 = arith.constant 2 : index
    %c1_44 = arith.constant 1 : index
    %c0_45 = arith.constant 0 : index
    %103 = vector.load %arg1[%c0_42, %c2_43, %c1_44, %c0_45] : memref<1x4x18x144xf32, #tpu.memory_space<vmem>>, vector<1x1x16x144xf32>
    %104 = vector.shape_cast %103 : vector<1x1x16x144xf32> to vector<16x144xf32>
    %105 = vector.extract_strided_slice %104 {offsets = [0, 0], sizes = [16, 128], strides = [1, 1]} : vector<16x144xf32> to vector<16x128xf32>
    %c14 = arith.constant 14 : index
    %c0_46 = arith.constant 0 : index
    %106 = vector.load %arg2[%c14, %c0_46] : memref<36x128xf32, #tpu.memory_space<vmem>>, vector<1x128xf32>
    %107 = vector.broadcast %106 : vector<1x128xf32> to vector<16x128xf32>
    %108 = arith.mulf %105, %107 : vector<16x128xf32>
    %109 = arith.addf %102, %108 : vector<16x128xf32>
    %110 = vector.extract_strided_slice %104 {offsets = [0, 8], sizes = [16, 128], strides = [1, 1]} : vector<16x144xf32> to vector<16x128xf32>
    %c18 = arith.constant 18 : index
    %c0_47 = arith.constant 0 : index
    %111 = vector.load %arg2[%c18, %c0_47] : memref<36x128xf32, #tpu.memory_space<vmem>>, vector<1x128xf32>
    %112 = vector.broadcast %111 : vector<1x128xf32> to vector<16x128xf32>
    %113 = arith.mulf %110, %112 : vector<16x128xf32>
    %114 = arith.addf %109, %113 : vector<16x128xf32>
    %115 = vector.extract_strided_slice %104 {offsets = [0, 16], sizes = [16, 128], strides = [1, 1]} : vector<16x144xf32> to vector<16x128xf32>
    %c22 = arith.constant 22 : index
    %c0_48 = arith.constant 0 : index
    %116 = vector.load %arg2[%c22, %c0_48] : memref<36x128xf32, #tpu.memory_space<vmem>>, vector<1x128xf32>
    %117 = vector.broadcast %116 : vector<1x128xf32> to vector<16x128xf32>
    %118 = arith.mulf %115, %117 : vector<16x128xf32>
    %119 = arith.addf %114, %118 : vector<16x128xf32>
    %c0_49 = arith.constant 0 : index
    %c3_50 = arith.constant 3 : index
    %c1_51 = arith.constant 1 : index
    %c0_52 = arith.constant 0 : index
    %120 = vector.load %arg1[%c0_49, %c3_50, %c1_51, %c0_52] : memref<1x4x18x144xf32, #tpu.memory_space<vmem>>, vector<1x1x16x144xf32>
    %121 = vector.shape_cast %120 : vector<1x1x16x144xf32> to vector<16x144xf32>
    %122 = vector.extract_strided_slice %121 {offsets = [0, 0], sizes = [16, 128], strides = [1, 1]} : vector<16x144xf32> to vector<16x128xf32>
    %c15 = arith.constant 15 : index
    %c0_53 = arith.constant 0 : index
    %123 = vector.load %arg2[%c15, %c0_53] : memref<36x128xf32, #tpu.memory_space<vmem>>, vector<1x128xf32>
    %124 = vector.broadcast %123 : vector<1x128xf32> to vector<16x128xf32>
    %125 = arith.mulf %122, %124 : vector<16x128xf32>
    %126 = arith.addf %119, %125 : vector<16x128xf32>
    %127 = vector.extract_strided_slice %121 {offsets = [0, 8], sizes = [16, 128], strides = [1, 1]} : vector<16x144xf32> to vector<16x128xf32>
    %c19 = arith.constant 19 : index
    %c0_54 = arith.constant 0 : index
    %128 = vector.load %arg2[%c19, %c0_54] : memref<36x128xf32, #tpu.memory_space<vmem>>, vector<1x128xf32>
    %129 = vector.broadcast %128 : vector<1x128xf32> to vector<16x128xf32>
    %130 = arith.mulf %127, %129 : vector<16x128xf32>
    %131 = arith.addf %126, %130 : vector<16x128xf32>
    %132 = vector.extract_strided_slice %121 {offsets = [0, 16], sizes = [16, 128], strides = [1, 1]} : vector<16x144xf32> to vector<16x128xf32>
    %c23 = arith.constant 23 : index
    %c0_55 = arith.constant 0 : index
    %133 = vector.load %arg2[%c23, %c0_55] : memref<36x128xf32, #tpu.memory_space<vmem>>, vector<1x128xf32>
    %134 = vector.broadcast %133 : vector<1x128xf32> to vector<16x128xf32>
    %135 = arith.mulf %132, %134 : vector<16x128xf32>
    %136 = arith.addf %131, %135 : vector<16x128xf32>
    %c0_56 = arith.constant 0 : index
    %c0_57 = arith.constant 0 : index
    %c2_58 = arith.constant 2 : index
    %c0_59 = arith.constant 0 : index
    %137 = vector.load %arg1[%c0_56, %c0_57, %c2_58, %c0_59] : memref<1x4x18x144xf32, #tpu.memory_space<vmem>>, vector<1x1x16x144xf32>
    %138 = vector.shape_cast %137 : vector<1x1x16x144xf32> to vector<16x144xf32>
    %139 = vector.extract_strided_slice %138 {offsets = [0, 0], sizes = [16, 128], strides = [1, 1]} : vector<16x144xf32> to vector<16x128xf32>
    %c24 = arith.constant 24 : index
    %c0_60 = arith.constant 0 : index
    %140 = vector.load %arg2[%c24, %c0_60] : memref<36x128xf32, #tpu.memory_space<vmem>>, vector<1x128xf32>
    %141 = vector.broadcast %140 : vector<1x128xf32> to vector<16x128xf32>
    %142 = arith.mulf %139, %141 : vector<16x128xf32>
    %143 = arith.addf %136, %142 : vector<16x128xf32>
    %144 = vector.extract_strided_slice %138 {offsets = [0, 8], sizes = [16, 128], strides = [1, 1]} : vector<16x144xf32> to vector<16x128xf32>
    %c28 = arith.constant 28 : index
    %c0_61 = arith.constant 0 : index
    %145 = vector.load %arg2[%c28, %c0_61] : memref<36x128xf32, #tpu.memory_space<vmem>>, vector<1x128xf32>
    %146 = vector.broadcast %145 : vector<1x128xf32> to vector<16x128xf32>
    %147 = arith.mulf %144, %146 : vector<16x128xf32>
    %148 = arith.addf %143, %147 : vector<16x128xf32>
    %149 = vector.extract_strided_slice %138 {offsets = [0, 16], sizes = [16, 128], strides = [1, 1]} : vector<16x144xf32> to vector<16x128xf32>
    %c32 = arith.constant 32 : index
    %c0_62 = arith.constant 0 : index
    %150 = vector.load %arg2[%c32, %c0_62] : memref<36x128xf32, #tpu.memory_space<vmem>>, vector<1x128xf32>
    %151 = vector.broadcast %150 : vector<1x128xf32> to vector<16x128xf32>
    %152 = arith.mulf %149, %151 : vector<16x128xf32>
    %153 = arith.addf %148, %152 : vector<16x128xf32>
    %c0_63 = arith.constant 0 : index
    %c1_64 = arith.constant 1 : index
    %c2_65 = arith.constant 2 : index
    %c0_66 = arith.constant 0 : index
    %154 = vector.load %arg1[%c0_63, %c1_64, %c2_65, %c0_66] : memref<1x4x18x144xf32, #tpu.memory_space<vmem>>, vector<1x1x16x144xf32>
    %155 = vector.shape_cast %154 : vector<1x1x16x144xf32> to vector<16x144xf32>
    %156 = vector.extract_strided_slice %155 {offsets = [0, 0], sizes = [16, 128], strides = [1, 1]} : vector<16x144xf32> to vector<16x128xf32>
    %c25 = arith.constant 25 : index
    %c0_67 = arith.constant 0 : index
    %157 = vector.load %arg2[%c25, %c0_67] : memref<36x128xf32, #tpu.memory_space<vmem>>, vector<1x128xf32>
    %158 = vector.broadcast %157 : vector<1x128xf32> to vector<16x128xf32>
    %159 = arith.mulf %156, %158 : vector<16x128xf32>
    %160 = arith.addf %153, %159 : vector<16x128xf32>
    %161 = vector.extract_strided_slice %155 {offsets = [0, 8], sizes = [16, 128], strides = [1, 1]} : vector<16x144xf32> to vector<16x128xf32>
    %c29 = arith.constant 29 : index
    %c0_68 = arith.constant 0 : index
    %162 = vector.load %arg2[%c29, %c0_68] : memref<36x128xf32, #tpu.memory_space<vmem>>, vector<1x128xf32>
    %163 = vector.broadcast %162 : vector<1x128xf32> to vector<16x128xf32>
    %164 = arith.mulf %161, %163 : vector<16x128xf32>
    %165 = arith.addf %160, %164 : vector<16x128xf32>
    %166 = vector.extract_strided_slice %155 {offsets = [0, 16], sizes = [16, 128], strides = [1, 1]} : vector<16x144xf32> to vector<16x128xf32>
    %c33 = arith.constant 33 : index
    %c0_69 = arith.constant 0 : index
    %167 = vector.load %arg2[%c33, %c0_69] : memref<36x128xf32, #tpu.memory_space<vmem>>, vector<1x128xf32>
    %168 = vector.broadcast %167 : vector<1x128xf32> to vector<16x128xf32>
    %169 = arith.mulf %166, %168 : vector<16x128xf32>
    %170 = arith.addf %165, %169 : vector<16x128xf32>
    %c0_70 = arith.constant 0 : index
    %c2_71 = arith.constant 2 : index
    %c2_72 = arith.constant 2 : index
    %c0_73 = arith.constant 0 : index
    %171 = vector.load %arg1[%c0_70, %c2_71, %c2_72, %c0_73] : memref<1x4x18x144xf32, #tpu.memory_space<vmem>>, vector<1x1x16x144xf32>
    %172 = vector.shape_cast %171 : vector<1x1x16x144xf32> to vector<16x144xf32>
    %173 = vector.extract_strided_slice %172 {offsets = [0, 0], sizes = [16, 128], strides = [1, 1]} : vector<16x144xf32> to vector<16x128xf32>
    %c26 = arith.constant 26 : index
    %c0_74 = arith.constant 0 : index
    %174 = vector.load %arg2[%c26, %c0_74] : memref<36x128xf32, #tpu.memory_space<vmem>>, vector<1x128xf32>
    %175 = vector.broadcast %174 : vector<1x128xf32> to vector<16x128xf32>
    %176 = arith.mulf %173, %175 : vector<16x128xf32>
    %177 = arith.addf %170, %176 : vector<16x128xf32>
    %178 = vector.extract_strided_slice %172 {offsets = [0, 8], sizes = [16, 128], strides = [1, 1]} : vector<16x144xf32> to vector<16x128xf32>
    %c30 = arith.constant 30 : index
    %c0_75 = arith.constant 0 : index
    %179 = vector.load %arg2[%c30, %c0_75] : memref<36x128xf32, #tpu.memory_space<vmem>>, vector<1x128xf32>
    %180 = vector.broadcast %179 : vector<1x128xf32> to vector<16x128xf32>
    %181 = arith.mulf %178, %180 : vector<16x128xf32>
    %182 = arith.addf %177, %181 : vector<16x128xf32>
    %183 = vector.extract_strided_slice %172 {offsets = [0, 16], sizes = [16, 128], strides = [1, 1]} : vector<16x144xf32> to vector<16x128xf32>
    %c34 = arith.constant 34 : index
    %c0_76 = arith.constant 0 : index
    %184 = vector.load %arg2[%c34, %c0_76] : memref<36x128xf32, #tpu.memory_space<vmem>>, vector<1x128xf32>
    %185 = vector.broadcast %184 : vector<1x128xf32> to vector<16x128xf32>
    %186 = arith.mulf %183, %185 : vector<16x128xf32>
    %187 = arith.addf %182, %186 : vector<16x128xf32>
    %c0_77 = arith.constant 0 : index
    %c3_78 = arith.constant 3 : index
    %c2_79 = arith.constant 2 : index
    %c0_80 = arith.constant 0 : index
    %188 = vector.load %arg1[%c0_77, %c3_78, %c2_79, %c0_80] : memref<1x4x18x144xf32, #tpu.memory_space<vmem>>, vector<1x1x16x144xf32>
    %189 = vector.shape_cast %188 : vector<1x1x16x144xf32> to vector<16x144xf32>
    %190 = vector.extract_strided_slice %189 {offsets = [0, 0], sizes = [16, 128], strides = [1, 1]} : vector<16x144xf32> to vector<16x128xf32>
    %c27 = arith.constant 27 : index
    %c0_81 = arith.constant 0 : index
    %191 = vector.load %arg2[%c27, %c0_81] : memref<36x128xf32, #tpu.memory_space<vmem>>, vector<1x128xf32>
    %192 = vector.broadcast %191 : vector<1x128xf32> to vector<16x128xf32>
    %193 = arith.mulf %190, %192 : vector<16x128xf32>
    %194 = arith.addf %187, %193 : vector<16x128xf32>
    %195 = vector.extract_strided_slice %189 {offsets = [0, 8], sizes = [16, 128], strides = [1, 1]} : vector<16x144xf32> to vector<16x128xf32>
    %c31 = arith.constant 31 : index
    %c0_82 = arith.constant 0 : index
    %196 = vector.load %arg2[%c31, %c0_82] : memref<36x128xf32, #tpu.memory_space<vmem>>, vector<1x128xf32>
    %197 = vector.broadcast %196 : vector<1x128xf32> to vector<16x128xf32>
    %198 = arith.mulf %195, %197 : vector<16x128xf32>
    %199 = arith.addf %194, %198 : vector<16x128xf32>
    %200 = vector.extract_strided_slice %189 {offsets = [0, 16], sizes = [16, 128], strides = [1, 1]} : vector<16x144xf32> to vector<16x128xf32>
    %c35 = arith.constant 35 : index
    %c0_83 = arith.constant 0 : index
    %201 = vector.load %arg2[%c35, %c0_83] : memref<36x128xf32, #tpu.memory_space<vmem>>, vector<1x128xf32>
    %202 = vector.broadcast %201 : vector<1x128xf32> to vector<16x128xf32>
    %203 = arith.mulf %200, %202 : vector<16x128xf32>
    %204 = arith.addf %199, %203 : vector<16x128xf32>
    %c0_84 = arith.constant 0 : index
    %c0_85 = arith.constant 0 : index
    %205 = vector.load %arg3[%c0_84, %c0_85] : memref<1x128xf32, #tpu.memory_space<vmem>>, vector<1x128xf32>
    %c0_86 = arith.constant 0 : index
    %c0_87 = arith.constant 0 : index
    %206 = vector.load %arg4[%c0_86, %c0_87] : memref<1x128xf32, #tpu.memory_space<vmem>>, vector<1x128xf32>
    %207 = vector.extract_strided_slice %204 {offsets = [0, 0], sizes = [15, 128], strides = [1, 1]} : vector<16x128xf32> to vector<15x128xf32>
    %208 = vector.extract_strided_slice %204 {offsets = [1, 0], sizes = [15, 128], strides = [1, 1]} : vector<16x128xf32> to vector<15x128xf32>
    %209 = arith.maximumf %207, %208 : vector<15x128xf32>
    %210 = vector.extract_strided_slice %209 {offsets = [0, 0], sizes = [15, 120], strides = [1, 1]} : vector<15x128xf32> to vector<15x120xf32>
    %211 = vector.extract_strided_slice %209 {offsets = [0, 8], sizes = [15, 120], strides = [1, 1]} : vector<15x128xf32> to vector<15x120xf32>
    %212 = arith.maximumf %210, %211 : vector<15x120xf32>
    %213 = vector.extract_strided_slice %205 {offsets = [0, 0], sizes = [1, 120], strides = [1, 1]} : vector<1x128xf32> to vector<1x120xf32>
    %214 = vector.broadcast %213 : vector<1x120xf32> to vector<15x120xf32>
    %215 = arith.mulf %212, %214 : vector<15x120xf32>
    %216 = vector.extract_strided_slice %206 {offsets = [0, 0], sizes = [1, 120], strides = [1, 1]} : vector<1x128xf32> to vector<1x120xf32>
    %217 = vector.broadcast %216 : vector<1x120xf32> to vector<15x120xf32>
    %218 = arith.addf %215, %217 : vector<15x120xf32>
    %cst_88 = arith.constant 0.000000e+00 : f32
    %219 = vector.broadcast %cst_88 : f32 to vector<15x120xf32>
    %220 = arith.maximumf %218, %219 : vector<15x120xf32>
    %c0_89 = arith.constant 0 : index
    %c0_90 = arith.constant 0 : index
    %c0_91 = arith.constant 0 : index
    %221 = vector.load %arg5[%c0_89, %c0_90, %c0_91] : memref<1x16x128xf32, #tpu.memory_space<vmem>>, vector<1x15x120xf32>
    %222 = vector.shape_cast %221 : vector<1x15x120xf32> to vector<15x120xf32>
    %223 = vector.shape_cast %220 : vector<15x120xf32> to vector<1x15x120xf32>
    tpu.vector_store %arg5[%c0_89, %c0_90, %c0_91], %223 {strides = array<i32>} : memref<1x16x128xf32, #tpu.memory_space<vmem>>, vector<1x15x120xf32>,
    return
  }
  func.func @transform_0(%arg0: i32) -> (i32, i32, i32, i32) {
    %c0_i32 = arith.constant 0 : i32
    %c0_i32_0 = arith.constant 0 : i32
    %c0_i32_1 = arith.constant 0 : i32
    %c0_i32_2 = arith.constant 0 : i32
    return %arg0, %c0_i32, %c0_i32_0, %c0_i32_1 : i32, i32, i32, i32
  }
  func.func @transform_1(%arg0: i32) -> (i32, i32) {
    %c0_i32 = arith.constant 0 : i32
    %c0_i32_0 = arith.constant 0 : i32
    %c0_i32_1 = arith.constant 0 : i32
    return %c0_i32, %c0_i32_0 : i32, i32
  }
  func.func @transform_2(%arg0: i32) -> (i32, i32) {
    %c0_i32 = arith.constant 0 : i32
    %c0_i32_0 = arith.constant 0 : i32
    %c0_i32_1 = arith.constant 0 : i32
    return %c0_i32, %c0_i32_0 : i32, i32
  }
  func.func @transform_3(%arg0: i32) -> (i32, i32) {
    %c0_i32 = arith.constant 0 : i32
    %c0_i32_0 = arith.constant 0 : i32
    %c0_i32_1 = arith.constant 0 : i32
    return %c0_i32, %c0_i32_0 : i32, i32
  }
  func.func @transform_4(%arg0: i32) -> (i32, i32, i32) {
    %c0_i32 = arith.constant 0 : i32
    %c0_i32_0 = arith.constant 0 : i32
    %c0_i32_1 = arith.constant 0 : i32
    return %arg0, %c0_i32, %c0_i32_0 : i32, i32, i32
  }
}

</mosaic_0001>

<llo_original>
// kernel: tile.21
$region0: #{tile.21}
  #allocation0 [shape = 's32[1]{0}', space=sflag, size = 0x4, scoped, tag = 'scoped memory for tile.21']
  %s0 = inlined_call_operand.vmem [shape: f32[8], index: 0, kind: input, shape index: {}]
  %s1 = inlined_call_operand.vmem [shape: f32[16,8], index: 1, kind: output, shape index: {}]
  // Predicated region
  $region2: #{tile.21} parent=0 // pred_check
    _
  $region3: #{tile.21} parent=0 // pred_check_branch
    %3 = sbr.rel (0) target = $region5
  $region4: #{tile.21} parent=0 // pred_region
    _
  $region5: #{tile.21} parent=0 // pred_fallthru
    _
  %v4 = vld [vmem:[%s0] ss:$0 sm:$0xff]
  %5 = vst [vmem:[%s1] sm:$0xff] %v4
  %s6 = scalar_lea.vmem %s1, 8
  %7 = vst [vmem:[%s6] sm:$0xff] %v4

// kernel: tile.22
$region0: #{tile.22}
  %s0 = inlined_call_operand.vmem [shape: f32[16,8], index: 0, kind: input, shape index: {}]
  %s1 = inlined_call_operand.vmem [shape: f32[1,128], index: 1, kind: output, shape index: {}]
  $region1: #{tile.22} parent=0
    #allocation0 [shape = 'u8[4096]{0}', space=vmem, size = 0x1000, scoped, tag = 'scoped mem for output reshape']
    %v2 = vld [vmem:[%s0] sm:$0x1]
    %vm3 = vcmask 64512
    %4 = vst.msk [vmem:[#allocation0] sm:$0x1] %vm3, %v2
    %s5 = scalar_lea.vmem %s0, 15
    %v6 = vld [vmem:[%s5] sm:$0x1]
    %7 = vrot.lane.b32.xlu0 %v6, 120
    %v8 = vpop.permute.xlu0 %7
    %vm9 = vcmask 1048512
    %10 = vst.msk [vmem:[#allocation0] sm:$0x1] %vm9, %v8
    %s11 = scalar_lea.vmem %s0, 14
    %v12 = vld [vmem:[%s11] sm:$0x1]
    %13 = vrot.lane.b32.xlu0 %v12, 112
    %v14 = vpop.permute.xlu0 %13
    %vm15 = vcmask 982912
    %16 = vst.msk [vmem:[#allocation0] sm:$0x1] %vm15, %v14
    %s17 = scalar_lea.vmem %s0, 13
    %v18 = vld [vmem:[%s17] sm:$0x1]
    %19 = vrot.lane.b32.xlu0 %v18, 104
    %v20 = vpop.permute.xlu0 %19
    %vm21 = vcmask 917312
    %22 = vst.msk [vmem:[#allocation0] sm:$0x1] %vm21, %v20
    %s23 = scalar_lea.vmem %s0, 12
    %v24 = vld [vmem:[%s23] sm:$0x1]
    %25 = vrot.lane.b32.xlu0 %v24, 96
    %v26 = vpop.permute.xlu0 %25
    %vm27 = vcmask 851712
    %28 = vst.msk [vmem:[#allocation0] sm:$0x1] %vm27, %v26
    %s29 = scalar_lea.vmem %s0, 11
    %v30 = vld [vmem:[%s29] sm:$0x1]
    %31 = vrot.lane.b32.xlu0 %v30, 88
    %v32 = vpop.permute.xlu0 %31
    %vm33 = vcmask 786112
    %34 = vst.msk [vmem:[#allocation0] sm:$0x1] %vm33, %v32
    %s35 = scalar_lea.vmem %s0, 10
    %v36 = vld [vmem:[%s35] sm:$0x1]
    %37 = vrot.lane.b32.xlu0 %v36, 80
    %v38 = vpop.permute.xlu0 %37
    %vm39 = vcmask 720512
    %40 = vst.msk [vmem:[#allocation0] sm:$0x1] %vm39, %v38
    %s41 = scalar_lea.vmem %s0, 9
    %v42 = vld [vmem:[%s41] sm:$0x1]
    %43 = vrot.lane.b32.xlu0 %v42, 72
    %v44 = vpop.permute.xlu0 %43
    %vm45 = vcmask 654912
    %46 = vst.msk [vmem:[#allocation0] sm:$0x1] %vm45, %v44
    %s47 = scalar_lea.vmem %s0, 8
    %v48 = vld [vmem:[%s47] sm:$0x1]
    %49 = vrot.lane.b32.xlu0 %v48, 64
    %v50 = vpop.permute.xlu0 %49
    %vm51 = vcmask 589312
    %52 = vst.msk [vmem:[#allocation0] sm:$0x1] %vm51, %v50
    %s53 = scalar_lea.vmem %s0, 7
    %v54 = vld [vmem:[%s53] sm:$0x1]
    %55 = vrot.lane.b32.xlu0 %v54, 56
    %v56 = vpop.permute.xlu0 %55
    %vm57 = vcmask 523712
    %58 = vst.msk [vmem:[#allocation0] sm:$0x1] %vm57, %v56
    %s59 = scalar_lea.vmem %s0, 6
    %v60 = vld [vmem:[%s59] sm:$0x1]
    %61 = vrot.lane.b32.xlu0 %v60, 48
    %v62 = vpop.permute.xlu0 %61
    %vm63 = vcmask 458112
    %64 = vst.msk [vmem:[#allocation0] sm:$0x1] %vm63, %v62
    %s65 = scalar_lea.vmem %s0, 5
    %v66 = vld [vmem:[%s65] sm:$0x1]
    %67 = vrot.lane.b32.xlu0 %v66, 40
    %v68 = vpop.permute.xlu0 %67
    %vm69 = vcmask 392512
    %70 = vst.msk [vmem:[#allocation0] sm:$0x1] %vm69, %v68
    %s71 = scalar_lea.vmem %s0, 4
    %v72 = vld [vmem:[%s71] sm:$0x1]
    %73 = vrot.lane.b32.xlu0 %v72, 32
    %v74 = vpop.permute.xlu0 %73
    %vm75 = vcmask 326912
    %76 = vst.msk [vmem:[#allocation0] sm:$0x1] %vm75, %v74
    %s77 = scalar_lea.vmem %s0, 3
    %v78 = vld [vmem:[%s77] sm:$0x1]
    %79 = vrot.lane.b32.xlu0 %v78, 24
    %v80 = vpop.permute.xlu0 %79
    %vm81 = vcmask 261312
    %82 = vst.msk [vmem:[#allocation0] sm:$0x1] %vm81, %v80
    %s83 = scalar_lea.vmem %s0, 2
    %v84 = vld [vmem:[%s83] sm:$0x1]
    %85 = vrot.lane.b32.xlu0 %v84, 16
    %v86 = vpop.permute.xlu0 %85
    %vm87 = vcmask 195712
    %88 = vst.msk [vmem:[#allocation0] sm:$0x1] %vm87, %v86
    %s89 = scalar_lea.vmem %s0, 1
    %v90 = vld [vmem:[%s89] sm:$0x1]
    %91 = vrot.lane.b32.xlu0 %v90, 8
    %v92 = vpop.permute.xlu0 %91
    %vm93 = vcmask 130112
    %94 = vst.msk [vmem:[#allocation0] sm:$0x1] %vm93, %v92
    %s96 = sshllo.u32 0, 1
    %v98 = vld [vmem:[#allocation0] sm:%s96]
    %s99 = sshllo.u32 0, 1
    %100 = vst [vmem:[%s1] sm:%s99] %v98

// kernel: enc_block_forward.1
$region0: #{enc_block_forward.1}
  #allocation0 [shape = 'u32[]', space=smem, size = 0x4, offset = 0x4, fixed_abs, tag = 'smem constant byte address 0x4 - core index']
  #allocation1 [shape = 'u32[144,128]{1,0:T(1,128)}', space=vmem, size = 0x12000, scoped, tag = 'internal scratch']
  %s0 = inlined_call_operand.vmem [shape: f32[2,4,18,144], index: 0, kind: input, shape index: {}]
  %s1 = inlined_call_operand.vmem [shape: f32[36,128], index: 1, kind: input, shape index: {}]
  %s2 = inlined_call_operand.vmem [shape: f32[1,128], index: 2, kind: input, shape index: {}]
  %s3 = inlined_call_operand.vmem [shape: f32[1,128], index: 3, kind: input, shape index: {}]
  %s4 = inlined_call_operand.vmem [shape: f32[2,16,128], index: 4, kind: output, shape index: {}]
  %s5 = sld [smem:[#allocation0]]
  $region49: #{enc_block_forward.1} parent=0
    _
  %s7 = ssub.s32 1, %s5
  %s8 = scalar_select 0, %s7, %s5
  loop: start=0, step=1, limit=4
  $region2: #{enc_block_forward.1} parent=0 // loop_pre_header
    _
  $region3: #{enc_block_forward.1} parent=0 // loop_header
    %s10 = sphi 0, %s14
    %p11 = scmp.ge.s32.totalorder %s10, 4
    %s20 = sphi 0, %s22
    %s23 = sphi 0, %s20
    %s24 = sphi 0, %s23
    %s40 = sphi 0, %s24
    %s44 = sphi 0, %s44
    %s46 = sphi 0, %s44
    %s47 = sphi 0, %s46
    %s61 = sphi 0, %s47
    %s65 = sphi 0, %s65
    %s67 = sphi 0, %s65
    %s68 = sphi 0, %s67
    %s82 = sphi 0, %s68
    %s86 = sphi 0, %s86
    %s88 = sphi 0, %s86
    %s89 = sphi 0, %s88
    %s103 = sphi 0, %s89
    %s109 = sphi 0, %s111
    %s112 = sphi 0, %s109
    %s113 = sphi 0, %s112
    %s129 = sphi 0, %s113
  $region4: #{enc_block_forward.1} parent=0 // loop_header_branch
    %13 = sbr.rel (%p11) target = $region8
  $region5: #{enc_block_forward.1} parent=0 // loop_body
    %s15 = ssub.s32 %s10, 1
    %s16 = ssub.s32 %s10, 2
    %s17 = sadd.s32 %s10, 1
    %s18 = ssub.s32 %s10, %s17
    %p19 = scmp.eq.s32.totalorder %s18, 0
    %s21 = sadd.s32 %s20, 1
    %s22 = scalar_select %p19, %s20, %s21
    %p25 = pneg %p19
    %p26 = scmp.eq.s32.totalorder %s10, 1
    %p27 = por %p25, %p26
    %p28 = scmp.ne.s32.totalorder %s20, %s23
    %p29 = scmp.eq.s32.totalorder %s10, 0
    %p30 = por %p28, %p29
    %p31 = scmp.ne.s32.totalorder %s20, %s23
    %p32 = scmp.eq.s32.totalorder %s15, 1
    %p33 = por %p31, %p32
    %p34 = scmp.ne.s32.totalorder %s23, %s24
    %p35 = scmp.eq.s32.totalorder %s15, 0
    %p36 = por %p34, %p35
    %p37 = scmp.ne.s32.totalorder %s23, %s24
    %p38 = scmp.eq.s32.totalorder %s16, 1
    %p39 = por %p37, %p38
    %p41 = scmp.ne.s32.totalorder %s24, %s40
    %p42 = scmp.eq.s32.totalorder %s16, 0
    %p43 = por %p41, %p42
    %s45 = sadd.s32 %s44, 1
    %p48 = scmp.eq.s32.totalorder %s10, 1
    %p49 = scmp.ne.s32.totalorder %s44, %s46
    %p50 = scmp.eq.s32.totalorder %s10, 0
    %p51 = por %p49, %p50
    %p52 = scmp.ne.s32.totalorder %s44, %s46
    %p53 = scmp.eq.s32.totalorder %s15, 1
    %p54 = por %p52, %p53
    %p55 = scmp.ne.s32.totalorder %s46, %s47
    %p56 = scmp.eq.s32.totalorder %s15, 0
    %p57 = por %p55, %p56
    %p58 = scmp.ne.s32.totalorder %s46, %s47
    %p59 = scmp.eq.s32.totalorder %s16, 1
    %p60 = por %p58, %p59
    %p62 = scmp.ne.s32.totalorder %s47, %s61
    %p63 = scmp.eq.s32.totalorder %s16, 0
    %p64 = por %p62, %p63
    %s66 = sadd.s32 %s65, 1
    %p69 = scmp.eq.s32.totalorder %s10, 1
    %p70 = scmp.ne.s32.totalorder %s65, %s67
    %p71 = scmp.eq.s32.totalorder %s10, 0
    %p72 = por %p70, %p71
    %p73 = scmp.ne.s32.totalorder %s65, %s67
    %p74 = scmp.eq.s32.totalorder %s15, 1
    %p75 = por %p73, %p74
    %p76 = scmp.ne.s32.totalorder %s67, %s68
    %p77 = scmp.eq.s32.totalorder %s15, 0
    %p78 = por %p76, %p77
    %p79 = scmp.ne.s32.totalorder %s67, %s68
    %p80 = scmp.eq.s32.totalorder %s16, 1
    %p81 = por %p79, %p80
    %p83 = scmp.ne.s32.totalorder %s68, %s82
    %p84 = scmp.eq.s32.totalorder %s16, 0
    %p85 = por %p83, %p84
    %s87 = sadd.s32 %s86, 1
    %p90 = scmp.eq.s32.totalorder %s10, 1
    %p91 = scmp.ne.s32.totalorder %s86, %s88
    %p92 = scmp.eq.s32.totalorder %s10, 0
    %p93 = por %p91, %p92
    %p94 = scmp.ne.s32.totalorder %s86, %s88
    %p95 = scmp.eq.s32.totalorder %s15, 1
    %p96 = por %p94, %p95
    %p97 = scmp.ne.s32.totalorder %s88, %s89
    %p98 = scmp.eq.s32.totalorder %s15, 0
    %p99 = por %p97, %p98
    %p100 = scmp.ne.s32.totalorder %s88, %s89
    %p101 = scmp.eq.s32.totalorder %s16, 1
    %p102 = por %p100, %p101
    %p104 = scmp.ne.s32.totalorder %s89, %s103
    %p105 = scmp.eq.s32.totalorder %s16, 0
    %p106 = por %p104, %p105
    %s107 = ssub.s32 %s10, %s17
    %p108 = scmp.eq.s32.totalorder %s107, 0
    %s110 = sadd.s32 %s109, 1
    %s111 = scalar_select %p108, %s109, %s110
    %p114 = pneg %p108
    %p115 = scmp.eq.s32.totalorder %s10, 1
    %p116 = por %p114, %p115
    %p117 = scmp.ne.s32.totalorder %s109, %s112
    %p118 = scmp.eq.s32.totalorder %s10, 0
    %p119 = por %p117, %p118
    %p120 = scmp.ne.s32.totalorder %s109, %s112
    %p121 = scmp.eq.s32.totalorder %s15, 1
    %p122 = por %p120, %p121
    %p123 = scmp.ne.s32.totalorder %s112, %s113
    %p124 = scmp.eq.s32.totalorder %s15, 0
    %p125 = por %p123, %p124
    %p126 = scmp.ne.s32.totalorder %s112, %s113
    %p127 = scmp.eq.s32.totalorder %s16, 1
    %p128 = por %p126, %p127
    %p130 = scmp.ne.s32.totalorder %s113, %s129
    %p131 = scmp.eq.s32.totalorder %s16, 0
    %p132 = por %p130, %p131
    %p133 = scmp.le.s32.totalorder 1, %s10
    %p134 = scmp.lt.s32.totalorder %s10, 3
    %p135 = pnand %p133, %p134
    %p136 = pneg %p135
    // Predicated region
    $region9: #{enc_block_forward.1} parent=5 // pred_check
      _
    $region10: #{enc_block_forward.1} parent=5 // pred_check_branch
      %138 = sbr.rel (%p135) target = $region12
    $region11: #{enc_block_forward.1} parent=5 // pred_region
      %s139 = ssub.s32 %s10, 1
      // Predicated region
      $region13: #{enc_block_forward.1} parent=11 // pred_check
        %p140 = pneg %p57
      $region14: #{enc_block_forward.1} parent=11 // pred_check_branch
        %142 = sbr.rel (%p140) target = $region16
      $region15: #{enc_block_forward.1} parent=11 // pred_region
        _
      $region16: #{enc_block_forward.1} parent=11 // pred_fallthru
        _
      // Predicated region
      $region17: #{enc_block_forward.1} parent=11 // pred_check
        %p143 = pneg %p78
      $region18: #{enc_block_forward.1} parent=11 // pred_check_branch
        %145 = sbr.rel (%p143) target = $region20
      $region19: #{enc_block_forward.1} parent=11 // pred_region
        _
      $region20: #{enc_block_forward.1} parent=11 // pred_fallthru
        _
      // Predicated region
      $region21: #{enc_block_forward.1} parent=11 // pred_check
        %p146 = pneg %p99
      $region22: #{enc_block_forward.1} parent=11 // pred_check_branch
        %148 = sbr.rel (%p146) target = $region24
      $region23: #{enc_block_forward.1} parent=11 // pred_region
        _
      $region24: #{enc_block_forward.1} parent=11 // pred_fallthru
        _
    $region12: #{enc_block_forward.1} parent=5 // pred_fallthru
      _
    %p149 = scmp.lt.s32.totalorder %s10, 2
    // Predicated region
    $region25: #{enc_block_forward.1} parent=5 // pred_check
      %p150 = pneg %p149
    $region26: #{enc_block_forward.1} parent=5 // pred_check_branch
      %152 = sbr.rel (%p150) target = $region28
    $region27: #{enc_block_forward.1} parent=5 // pred_region
      // Predicated region
      $region29: #{enc_block_forward.1} parent=27 // pred_check
        %p153 = pneg %p30
      $region30: #{enc_block_forward.1} parent=27 // pred_check_branch
        %155 = sbr.rel (%p153) target = $region32
      $region31: #{enc_block_forward.1} parent=27 // pred_region
        %p156 = scmp.lt.s32.totalorder %s10, 1
        %s157 = scalar_select %p156, %s10, 1
        %s158 = smul.addr %s157, 24
        %s159 = smul.addr %s158, 8
        %s160 = scalar_lea.vmem %s0, %s159
      $region32: #{enc_block_forward.1} parent=27 // pred_fallthru
        _
    $region28: #{enc_block_forward.1} parent=5 // pred_fallthru
      _
    %p161 = scmp.le.s32.totalorder 1, %s10
    %p162 = scmp.lt.s32.totalorder %s10, 3
    %p163 = pnand %p161, %p162
    %p164 = pneg %p163
    // Predicated region
    $region33: #{enc_block_forward.1} parent=5 // pred_check
      _
    $region34: #{enc_block_forward.1} parent=5 // pred_check_branch
      %166 = sbr.rel (%p163) target = $region36
    $region35: #{enc_block_forward.1} parent=5 // pred_region
      %s167 = ssub.s32 %s10, 1
      %p168 = scmp.lt.s32.totalorder %s15, 1
      %s169 = scalar_select %p168, %s15, 1
      %s170 = smul.addr %s169, 24
      %s171 = smul.addr %s170, 8
      %s172 = scalar_lea.vmem %s0, %s171
      %p173 = pneg %p36
      %p174 = pneg %p33
      %p175 = pneg %p57
      %p176 = pneg %p54
      %p177 = pneg %p78
      %p178 = pneg %p75
      %p179 = pneg %p99
      %p180 = pneg %p96
      %p181 = pneg %p125
      %p182 = pneg %p122
      %p183 = scmp.lt.s32.totalorder %s15, 1
      %s184 = scalar_select %p183, %s15, 1
      %s185 = smul.addr %s184, 2
      %s186 = smul.addr %s185, 8
      %s187 = scalar_lea.vmem %s4, %s186
      %p188 = scmp.lt.s32.totalorder %s15, 1
      %s189 = scalar_select %p188, %s15, 1
      %s190 = smul.addr %s189, 24
      %s191 = smul.addr %s190, 8
      %s192 = scalar_lea.vmem %s0, %s191
      %p193 = scmp.lt.s32.totalorder %s15, 1
      %s194 = scalar_select %p193, %s15, 1
      %s195 = smul.addr %s194, 2
      %s196 = smul.addr %s195, 8
      %s197 = scalar_lea.vmem %s4, %s196
      %v198 = vld [vmem:[%s192] sm:$0xff]
      %v199 = vld [vmem:[%s192 + $0x8] sm:$0xff]
      %v200 = vld [vmem:[%s192 + $0x10] sm:$0xff]
      %v201 = vld [vmem:[%s192 + $0x18] sm:$0xff]
      %v202 = vld [vmem:[%s1] sm:$0x1]
      %v203 = vlaneseq
      %v204 = vshrl.u32 %v203, 7
      %v205 = vsub.s32 0, %v204
      %v206 = vrot.slane %v202, %v205
      %v207 = vmul.f32 %v198, %v206
      %v208 = vmul.f32 %v200, %v206
      %v209 = vadd.f32 %v207, 0.0
      %v210 = vadd.f32 %v208, 0.0
      %v211 = vld [vmem:[%s1 + $0x4] sm:$0x1]
      %v212 = vlaneseq
      %v213 = vshrl.u32 %v212, 7
      %v214 = vsub.s32 0, %v213
      %v215 = vrot.slane %v211, %v214
      %217 = vrot.lane.b32.xlu0 %v215, 8
      %v218 = vpop.permute.xlu0 %217
      %v220 = vmul.f32 %v198, %v218
      %v221 = vmul.f32 %v199, %v218
      %v222 = vmul.f32 %v200, %v218
      %v223 = vmul.f32 %v201, %v218
      %228 = vrot.lane.b32.xlu0 %v220, 120
      %v229 = vpop.permute.xlu0 %228
      %230 = vrot.lane.b32.xlu0 %v221, 120
      %v231 = vpop.permute.xlu0 %230
      %232 = vrot.lane.b32.xlu0 %v222, 120
      %v233 = vpop.permute.xlu0 %232
      %234 = vrot.lane.b32.xlu0 %v223, 120
      %v235 = vpop.permute.xlu0 %234
      %vm236 = vcmask 982016
      %v237 = vsel %vm236, %v229, %v231
      %v238 = vsel %vm236, %v233, %v235
      %v241 = vadd.f32 %v209, %v237
      %v242 = vadd.f32 %v210, %v238
      %v243 = vld [vmem:[%s1 + $0x8] sm:$0x1]
      %v244 = vlaneseq
      %v245 = vshrl.u32 %v244, 7
      %v246 = vsub.s32 0, %v245
      %v247 = vrot.slane %v243, %v246
      %249 = vrot.lane.b32.xlu0 %v247, 16
      %v250 = vpop.permute.xlu0 %249
      %v252 = vmul.f32 %v198, %v250
      %v253 = vmul.f32 %v199, %v250
      %v254 = vmul.f32 %v200, %v250
      %v255 = vmul.f32 %v201, %v250
      %260 = vrot.lane.b32.xlu0 %v252, 112
      %v261 = vpop.permute.xlu0 %260
      %262 = vrot.lane.b32.xlu0 %v253, 112
      %v263 = vpop.permute.xlu0 %262
      %264 = vrot.lane.b32.xlu0 %v254, 112
      %v265 = vpop.permute.xlu0 %264
      %266 = vrot.lane.b32.xlu0 %v255, 112
      %v267 = vpop.permute.xlu0 %266
      %vm268 = vcmask 916480
      %v269 = vsel %vm268, %v261, %v263
      %v270 = vsel %vm268, %v265, %v267
      %v273 = vadd.f32 %v241, %v269
      %v274 = vadd.f32 %v242, %v270
      %s275 = scalar_lea.vmem %s192, 48
      %v276 = vld [vmem:[%s275] sm:$0xff]
      %v277 = vld [vmem:[%s275 + $0x8] sm:$0xff]
      %v278 = vld [vmem:[%s275 + $0x10] sm:$0xff]
      %v279 = vld [vmem:[%s275 + $0x18] sm:$0xff]
      %v280 = vld [vmem:[%s1 + $0x1] sm:$0x1]
      %v281 = vlaneseq
      %v282 = vshrl.u32 %v281, 7
      %v283 = vsub.s32 0, %v282
      %v284 = vrot.slane %v280, %v283
      %v285 = vmul.f32 %v276, %v284
      %v286 = vmul.f32 %v278, %v284
      %v287 = vadd.f32 %v273, %v285
      %v288 = vadd.f32 %v274, %v286
      %v289 = vld [vmem:[%s1 + $0x5] sm:$0x1]
      %v290 = vlaneseq
      %v291 = vshrl.u32 %v290, 7
      %v292 = vsub.s32 0, %v291
      %v293 = vrot.slane %v289, %v292
      %295 = vrot.lane.b32.xlu0 %v293, 8
      %v296 = vpop.permute.xlu0 %295
      %v298 = vmul.f32 %v276, %v296
      %v299 = vmul.f32 %v277, %v296
      %v300 = vmul.f32 %v278, %v296
      %v301 = vmul.f32 %v279, %v296
      %306 = vrot.lane.b32.xlu0 %v298, 120
      %v307 = vpop.permute.xlu0 %306
      %308 = vrot.lane.b32.xlu0 %v299, 120
      %v309 = vpop.permute.xlu0 %308
      %310 = vrot.lane.b32.xlu0 %v300, 120
      %v311 = vpop.permute.xlu0 %310
      %312 = vrot.lane.b32.xlu0 %v301, 120
      %v313 = vpop.permute.xlu0 %312
      %v314 = vsel %vm236, %v307, %v309
      %v315 = vsel %vm236, %v311, %v313
      %v318 = vadd.f32 %v287, %v314
      %v319 = vadd.f32 %v288, %v315
      %v320 = vld [vmem:[%s1 + $0x9] sm:$0x1]
      %v321 = vlaneseq
      %v322 = vshrl.u32 %v321, 7
      %v323 = vsub.s32 0, %v322
      %v324 = vrot.slane %v320, %v323
      %326 = vrot.lane.b32.xlu0 %v324, 16
      %v327 = vpop.permute.xlu0 %326
      %v329 = vmul.f32 %v276, %v327
      %v330 = vmul.f32 %v277, %v327
      %v331 = vmul.f32 %v278, %v327
      %v332 = vmul.f32 %v279, %v327
      %337 = vrot.lane.b32.xlu0 %v329, 112
      %v338 = vpop.permute.xlu0 %337
      %339 = vrot.lane.b32.xlu0 %v330, 112
      %v340 = vpop.permute.xlu0 %339
      %341 = vrot.lane.b32.xlu0 %v331, 112
      %v342 = vpop.permute.xlu0 %341
      %343 = vrot.lane.b32.xlu0 %v332, 112
      %v344 = vpop.permute.xlu0 %343
      %v345 = vsel %vm268, %v338, %v340
      %v346 = vsel %vm268, %v342, %v344
      %v349 = vadd.f32 %v318, %v345
      %v350 = vadd.f32 %v319, %v346
      %s351 = scalar_lea.vmem %s192, 96
      %v352 = vld [vmem:[%s351] sm:$0xff]
      %v353 = vld [vmem:[%s351 + $0x8] sm:$0xff]
      %v354 = vld [vmem:[%s351 + $0x10] sm:$0xff]
      %v355 = vld [vmem:[%s351 + $0x18] sm:$0xff]
      %v356 = vld [vmem:[%s1 + $0x2] sm:$0x1]
      %v357 = vlaneseq
      %v358 = vshrl.u32 %v357, 7
      %v359 = vsub.s32 0, %v358
      %v360 = vrot.slane %v356, %v359
      %v361 = vmul.f32 %v352, %v360
      %v362 = vmul.f32 %v354, %v360
      %v363 = vadd.f32 %v349, %v361
      %v364 = vadd.f32 %v350, %v362
      %v365 = vld [vmem:[%s1 + $0x6] sm:$0x1]
      %v366 = vlaneseq
      %v367 = vshrl.u32 %v366, 7
      %v368 = vsub.s32 0, %v367
      %v369 = vrot.slane %v365, %v368
      %371 = vrot.lane.b32.xlu0 %v369, 8
      %v372 = vpop.permute.xlu0 %371
      %v374 = vmul.f32 %v352, %v372
      %v375 = vmul.f32 %v353, %v372
      %v376 = vmul.f32 %v354, %v372
      %v377 = vmul.f32 %v355, %v372
      %382 = vrot.lane.b32.xlu0 %v374, 120
      %v383 = vpop.permute.xlu0 %382
      %384 = vrot.lane.b32.xlu0 %v375, 120
      %v385 = vpop.permute.xlu0 %384
      %386 = vrot.lane.b32.xlu0 %v376, 120
      %v387 = vpop.permute.xlu0 %386
      %388 = vrot.lane.b32.xlu0 %v377, 120
      %v389 = vpop.permute.xlu0 %388
      %v390 = vsel %vm236, %v383, %v385
      %v391 = vsel %vm236, %v387, %v389
      %v394 = vadd.f32 %v363, %v390
      %v395 = vadd.f32 %v364, %v391
      %v396 = vld [vmem:[%s1 + $0xa] sm:$0x1]
      %v397 = vlaneseq
      %v398 = vshrl.u32 %v397, 7
      %v399 = vsub.s32 0, %v398
      %v400 = vrot.slane %v396, %v399
      %402 = vrot.lane.b32.xlu0 %v400, 16
      %v403 = vpop.permute.xlu0 %402
      %v405 = vmul.f32 %v352, %v403
      %v406 = vmul.f32 %v353, %v403
      %v407 = vmul.f32 %v354, %v403
      %v408 = vmul.f32 %v355, %v403
      %413 = vrot.lane.b32.xlu0 %v405, 112
      %v414 = vpop.permute.xlu0 %413
      %415 = vrot.lane.b32.xlu0 %v406, 112
      %v416 = vpop.permute.xlu0 %415
      %417 = vrot.lane.b32.xlu0 %v407, 112
      %v418 = vpop.permute.xlu0 %417
      %419 = vrot.lane.b32.xlu0 %v408, 112
      %v420 = vpop.permute.xlu0 %419
      %v421 = vsel %vm268, %v414, %v416
      %v422 = vsel %vm268, %v418, %v420
      %v425 = vadd.f32 %v394, %v421
      %v426 = vadd.f32 %v395, %v422
      %s427 = scalar_lea.vmem %s192, 144
      %v428 = vld [vmem:[%s427] sm:$0xff]
      %v429 = vld [vmem:[%s427 + $0x8] sm:$0xff]
      %v430 = vld [vmem:[%s427 + $0x10] sm:$0xff]
      %v431 = vld [vmem:[%s427 + $0x18] sm:$0xff]
      %v432 = vld [vmem:[%s1 + $0x3] sm:$0x1]
      %v433 = vlaneseq
      %v434 = vshrl.u32 %v433, 7
      %v435 = vsub.s32 0, %v434
      %v436 = vrot.slane %v432, %v435
      %v437 = vmul.f32 %v428, %v436
      %v438 = vmul.f32 %v430, %v436
      %v439 = vadd.f32 %v425, %v437
      %v440 = vadd.f32 %v426, %v438
      %v441 = vld [vmem:[%s1 + $0x7] sm:$0x1]
      %v442 = vlaneseq
      %v443 = vshrl.u32 %v442, 7
      %v444 = vsub.s32 0, %v443
      %v445 = vrot.slane %v441, %v444
      %447 = vrot.lane.b32.xlu0 %v445, 8
      %v448 = vpop.permute.xlu0 %447
      %v450 = vmul.f32 %v428, %v448
      %v451 = vmul.f32 %v429, %v448
      %v452 = vmul.f32 %v430, %v448
      %v453 = vmul.f32 %v431, %v448
      %458 = vrot.lane.b32.xlu0 %v450, 120
      %v459 = vpop.permute.xlu0 %458
      %460 = vrot.lane.b32.xlu0 %v451, 120
      %v461 = vpop.permute.xlu0 %460
      %462 = vrot.lane.b32.xlu0 %v452, 120
      %v463 = vpop.permute.xlu0 %462
      %464 = vrot.lane.b32.xlu0 %v453, 120
      %v465 = vpop.permute.xlu0 %464
      %v466 = vsel %vm236, %v459, %v461
      %v467 = vsel %vm236, %v463, %v465
      %v470 = vadd.f32 %v439, %v466
      %v471 = vadd.f32 %v440, %v467
      %v472 = vld [vmem:[%s1 + $0xb] sm:$0x1]
      %v473 = vlaneseq
      %v474 = vshrl.u32 %v473, 7
      %v475 = vsub.s32 0, %v474
      %v476 = vrot.slane %v472, %v475
      %478 = vrot.lane.b32.xlu0 %v476, 16
      %v479 = vpop.permute.xlu0 %478
      %v481 = vmul.f32 %v428, %v479
      %v482 = vmul.f32 %v429, %v479
      %v483 = vmul.f32 %v430, %v479
      %v484 = vmul.f32 %v431, %v479
      %489 = vrot.lane.b32.xlu0 %v481, 112
      %v490 = vpop.permute.xlu0 %489
      %491 = vrot.lane.b32.xlu0 %v482, 112
      %v492 = vpop.permute.xlu0 %491
      %493 = vrot.lane.b32.xlu0 %v483, 112
      %v494 = vpop.permute.xlu0 %493
      %495 = vrot.lane.b32.xlu0 %v484, 112
      %v496 = vpop.permute.xlu0 %495
      %v497 = vsel %vm268, %v490, %v492
      %v498 = vsel %vm268, %v494, %v496
      %v501 = vadd.f32 %v470, %v497
      %v502 = vadd.f32 %v471, %v498
      %v503 = vld [vmem:[%s192] sm:$0xfe]
      %v504 = vld [vmem:[%s192 + $0x8] sm:$0xfe]
      %v505 = vld [vmem:[%s192 + $0x20] sm:$0x1]
      %v506 = vld [vmem:[%s192 + $0x28] sm:$0x1]
      %v507 = vld [vmem:[%s1 + $0xc] sm:$0x1]
      %v508 = vlaneseq
      %v509 = vshrl.u32 %v508, 7
      %v510 = vsub.s32 0, %v509
      %v511 = vrot.slane %v507, %v510
      %v512 = vmul.f32 %v503, %v511
      %v513 = vmul.f32 %v200, %v511
      %v514 = vmul.f32 %v505, %v511
      %vm518 = vcmask 1046528
      %v519 = vrot.slane %v512, 1
      %v520 = vrot.slane %v513, 1
      %v521 = vsel %vm518, %v519, %v520
      %v522 = vrot.slane %v514, 1
      %v523 = vsel %vm518, %v520, %v522
      %v526 = vadd.f32 %v501, %v521
      %v527 = vadd.f32 %v502, %v523
      %v528 = vld [vmem:[%s1 + $0x10] sm:$0x1]
      %v529 = vlaneseq
      %v530 = vshrl.u32 %v529, 7
      %v531 = vsub.s32 0, %v530
      %v532 = vrot.slane %v528, %v531
      %534 = vrot.lane.b32.xlu0 %v532, 8
      %v535 = vpop.permute.xlu0 %534
      %v537 = vmul.f32 %v503, %v535
      %v538 = vmul.f32 %v504, %v535
      %v539 = vmul.f32 %v200, %v535
      %v540 = vmul.f32 %v201, %v535
      %v541 = vmul.f32 %v505, %v535
      %v542 = vmul.f32 %v506, %v535
      %v549 = vrot.slane %v537, 1
      %v550 = vrot.slane %v539, 1
      %v551 = vsel %vm518, %v549, %v550
      %v552 = vrot.slane %v538, 1
      %v553 = vrot.slane %v540, 1
      %v554 = vsel %vm518, %v552, %v553
      %v555 = vrot.slane %v541, 1
      %v556 = vsel %vm518, %v550, %v555
      %v557 = vrot.slane %v542, 1
      %v558 = vsel %vm518, %v553, %v557
      %559 = vrot.lane.b32.xlu0 %v551, 120
      %v560 = vpop.permute.xlu0 %559
      %561 = vrot.lane.b32.xlu0 %v554, 120
      %v562 = vpop.permute.xlu0 %561
      %563 = vrot.lane.b32.xlu0 %v556, 120
      %v564 = vpop.permute.xlu0 %563
      %565 = vrot.lane.b32.xlu0 %v558, 120
      %v566 = vpop.permute.xlu0 %565
      %v567 = vsel %vm236, %v560, %v562
      %v568 = vsel %vm236, %v564, %v566
      %v571 = vadd.f32 %v526, %v567
      %v572 = vadd.f32 %v527, %v568
      %v573 = vld [vmem:[%s1 + $0x14] sm:$0x1]
      %v574 = vlaneseq
      %v575 = vshrl.u32 %v574, 7
      %v576 = vsub.s32 0, %v575
      %v577 = vrot.slane %v573, %v576
      %579 = vrot.lane.b32.xlu0 %v577, 16
      %v580 = vpop.permute.xlu0 %579
      %v582 = vmul.f32 %v503, %v580
      %v583 = vmul.f32 %v504, %v580
      %v584 = vmul.f32 %v200, %v580
      %v585 = vmul.f32 %v201, %v580
      %v586 = vmul.f32 %v505, %v580
      %v587 = vmul.f32 %v506, %v580
      %v594 = vrot.slane %v582, 1
      %v595 = vrot.slane %v584, 1
      %v596 = vsel %vm518, %v594, %v595
      %v597 = vrot.slane %v583, 1
      %v598 = vrot.slane %v585, 1
      %v599 = vsel %vm518, %v597, %v598
      %v600 = vrot.slane %v586, 1
      %v601 = vsel %vm518, %v595, %v600
      %v602 = vrot.slane %v587, 1
      %v603 = vsel %vm518, %v598, %v602
      %604 = vrot.lane.b32.xlu0 %v596, 112
      %v605 = vpop.permute.xlu0 %604
      %606 = vrot.lane.b32.xlu0 %v599, 112
      %v607 = vpop.permute.xlu0 %606
      %608 = vrot.lane.b32.xlu0 %v601, 112
      %v609 = vpop.permute.xlu0 %608
      %610 = vrot.lane.b32.xlu0 %v603, 112
      %v611 = vpop.permute.xlu0 %610
      %v612 = vsel %vm268, %v605, %v607
      %v613 = vsel %vm268, %v609, %v611
      %v616 = vadd.f32 %v571, %v612
      %v617 = vadd.f32 %v572, %v613
      %v618 = vld [vmem:[%s275] sm:$0xfe]
      %v619 = vld [vmem:[%s275 + $0x8] sm:$0xfe]
      %v620 = vld [vmem:[%s275 + $0x20] sm:$0x1]
      %v621 = vld [vmem:[%s275 + $0x28] sm:$0x1]
      %v622 = vld [vmem:[%s1 + $0xd] sm:$0x1]
      %v623 = vlaneseq
      %v624 = vshrl.u32 %v623, 7
      %v625 = vsub.s32 0, %v624
      %v626 = vrot.slane %v622, %v625
      %v627 = vmul.f32 %v618, %v626
      %v628 = vmul.f32 %v278, %v626
      %v629 = vmul.f32 %v620, %v626
      %v633 = vrot.slane %v627, 1
      %v634 = vrot.slane %v628, 1
      %v635 = vsel %vm518, %v633, %v634
      %v636 = vrot.slane %v629, 1
      %v637 = vsel %vm518, %v634, %v636
      %v640 = vadd.f32 %v616, %v635
      %v641 = vadd.f32 %v617, %v637
      %v642 = vld [vmem:[%s1 + $0x11] sm:$0x1]
      %v643 = vlaneseq
      %v644 = vshrl.u32 %v643, 7
      %v645 = vsub.s32 0, %v644
      %v646 = vrot.slane %v642, %v645
      %648 = vrot.lane.b32.xlu0 %v646, 8
      %v649 = vpop.permute.xlu0 %648
      %v651 = vmul.f32 %v618, %v649
      %v652 = vmul.f32 %v619, %v649
      %v653 = vmul.f32 %v278, %v649
      %v654 = vmul.f32 %v279, %v649
      %v655 = vmul.f32 %v620, %v649
      %v656 = vmul.f32 %v621, %v649
      %v663 = vrot.slane %v651, 1
      %v664 = vrot.slane %v653, 1
      %v665 = vsel %vm518, %v663, %v664
      %v666 = vrot.slane %v652, 1
      %v667 = vrot.slane %v654, 1
      %v668 = vsel %vm518, %v666, %v667
      %v669 = vrot.slane %v655, 1
      %v670 = vsel %vm518, %v664, %v669
      %v671 = vrot.slane %v656, 1
      %v672 = vsel %vm518, %v667, %v671
      %673 = vrot.lane.b32.xlu0 %v665, 120
      %v674 = vpop.permute.xlu0 %673
      %675 = vrot.lane.b32.xlu0 %v668, 120
      %v676 = vpop.permute.xlu0 %675
      %677 = vrot.lane.b32.xlu0 %v670, 120
      %v678 = vpop.permute.xlu0 %677
      %679 = vrot.lane.b32.xlu0 %v672, 120
      %v680 = vpop.permute.xlu0 %679
      %v681 = vsel %vm236, %v674, %v676
      %v682 = vsel %vm236, %v678, %v680
      %v685 = vadd.f32 %v640, %v681
      %v686 = vadd.f32 %v641, %v682
      %v687 = vld [vmem:[%s1 + $0x15] sm:$0x1]
      %v688 = vlaneseq
      %v689 = vshrl.u32 %v688, 7
      %v690 = vsub.s32 0, %v689
      %v691 = vrot.slane %v687, %v690
      %693 = vrot.lane.b32.xlu0 %v691, 16
      %v694 = vpop.permute.xlu0 %693
      %v696 = vmul.f32 %v618, %v694
      %v697 = vmul.f32 %v619, %v694
      %v698 = vmul.f32 %v278, %v694
      %v699 = vmul.f32 %v279, %v694
      %v700 = vmul.f32 %v620, %v694
      %v701 = vmul.f32 %v621, %v694
      %v708 = vrot.slane %v696, 1
      %v709 = vrot.slane %v698, 1
      %v710 = vsel %vm518, %v708, %v709
      %v711 = vrot.slane %v697, 1
      %v712 = vrot.slane %v699, 1
      %v713 = vsel %vm518, %v711, %v712
      %v714 = vrot.slane %v700, 1
      %v715 = vsel %vm518, %v709, %v714
      %v716 = vrot.slane %v701, 1
      %v717 = vsel %vm518, %v712, %v716
      %718 = vrot.lane.b32.xlu0 %v710, 112
      %v719 = vpop.permute.xlu0 %718
      %720 = vrot.lane.b32.xlu0 %v713, 112
      %v721 = vpop.permute.xlu0 %720
      %722 = vrot.lane.b32.xlu0 %v715, 112
      %v723 = vpop.permute.xlu0 %722
      %724 = vrot.lane.b32.xlu0 %v717, 112
      %v725 = vpop.permute.xlu0 %724
      %v726 = vsel %vm268, %v719, %v721
      %v727 = vsel %vm268, %v723, %v725
      %v730 = vadd.f32 %v685, %v726
      %v731 = vadd.f32 %v686, %v727
      %v732 = vld [vmem:[%s351] sm:$0xfe]
      %v733 = vld [vmem:[%s351 + $0x8] sm:$0xfe]
      %v734 = vld [vmem:[%s351 + $0x20] sm:$0x1]
      %v735 = vld [vmem:[%s351 + $0x28] sm:$0x1]
      %v736 = vld [vmem:[%s1 + $0xe] sm:$0x1]
      %v737 = vlaneseq
      %v738 = vshrl.u32 %v737, 7
      %v739 = vsub.s32 0, %v738
      %v740 = vrot.slane %v736, %v739
      %v741 = vmul.f32 %v732, %v740
      %v742 = vmul.f32 %v354, %v740
      %v743 = vmul.f32 %v734, %v740
      %v747 = vrot.slane %v741, 1
      %v748 = vrot.slane %v742, 1
      %v749 = vsel %vm518, %v747, %v748
      %v750 = vrot.slane %v743, 1
      %v751 = vsel %vm518, %v748, %v750
      %v754 = vadd.f32 %v730, %v749
      %v755 = vadd.f32 %v731, %v751
      %v756 = vld [vmem:[%s1 + $0x12] sm:$0x1]
      %v757 = vlaneseq
      %v758 = vshrl.u32 %v757, 7
      %v759 = vsub.s32 0, %v758
      %v760 = vrot.slane %v756, %v759
      %762 = vrot.lane.b32.xlu0 %v760, 8
      %v763 = vpop.permute.xlu0 %762
      %v765 = vmul.f32 %v732, %v763
      %v766 = vmul.f32 %v733, %v763
      %v767 = vmul.f32 %v354, %v763
      %v768 = vmul.f32 %v355, %v763
      %v769 = vmul.f32 %v734, %v763
      %v770 = vmul.f32 %v735, %v763
      %v777 = vrot.slane %v765, 1
      %v778 = vrot.slane %v767, 1
      %v779 = vsel %vm518, %v777, %v778
      %v780 = vrot.slane %v766, 1
      %v781 = vrot.slane %v768, 1
      %v782 = vsel %vm518, %v780, %v781
      %v783 = vrot.slane %v769, 1
      %v784 = vsel %vm518, %v778, %v783
      %v785 = vrot.slane %v770, 1
      %v786 = vsel %vm518, %v781, %v785
      %787 = vrot.lane.b32.xlu0 %v779, 120
      %v788 = vpop.permute.xlu0 %787
      %789 = vrot.lane.b32.xlu0 %v782, 120
      %v790 = vpop.permute.xlu0 %789
      %791 = vrot.lane.b32.xlu0 %v784, 120
      %v792 = vpop.permute.xlu0 %791
      %793 = vrot.lane.b32.xlu0 %v786, 120
      %v794 = vpop.permute.xlu0 %793
      %v795 = vsel %vm236, %v788, %v790
      %v796 = vsel %vm236, %v792, %v794
      %v799 = vadd.f32 %v754, %v795
      %v800 = vadd.f32 %v755, %v796
      %v801 = vld [vmem:[%s1 + $0x16] sm:$0x1]
      %v802 = vlaneseq
      %v803 = vshrl.u32 %v802, 7
      %v804 = vsub.s32 0, %v803
      %v805 = vrot.slane %v801, %v804
      %807 = vrot.lane.b32.xlu0 %v805, 16
      %v808 = vpop.permute.xlu0 %807
      %v810 = vmul.f32 %v732, %v808
      %v811 = vmul.f32 %v733, %v808
      %v812 = vmul.f32 %v354, %v808
      %v813 = vmul.f32 %v355, %v808
      %v814 = vmul.f32 %v734, %v808
      %v815 = vmul.f32 %v735, %v808
      %v822 = vrot.slane %v810, 1
      %v823 = vrot.slane %v812, 1
      %v824 = vsel %vm518, %v822, %v823
      %v825 = vrot.slane %v811, 1
      %v826 = vrot.slane %v813, 1
      %v827 = vsel %vm518, %v825, %v826
      %v828 = vrot.slane %v814, 1
      %v829 = vsel %vm518, %v823, %v828
      %v830 = vrot.slane %v815, 1
      %v831 = vsel %vm518, %v826, %v830
      %832 = vrot.lane.b32.xlu0 %v824, 112
      %v833 = vpop.permute.xlu0 %832
      %834 = vrot.lane.b32.xlu0 %v827, 112
      %v835 = vpop.permute.xlu0 %834
      %836 = vrot.lane.b32.xlu0 %v829, 112
      %v837 = vpop.permute.xlu0 %836
      %838 = vrot.lane.b32.xlu0 %v831, 112
      %v839 = vpop.permute.xlu0 %838
      %v840 = vsel %vm268, %v833, %v835
      %v841 = vsel %vm268, %v837, %v839
      %v844 = vadd.f32 %v799, %v840
      %v845 = vadd.f32 %v800, %v841
      %v846 = vld [vmem:[%s427] sm:$0xfe]
      %v847 = vld [vmem:[%s427 + $0x8] sm:$0xfe]
      %v848 = vld [vmem:[%s427 + $0x20] sm:$0x1]
      %v849 = vld [vmem:[%s427 + $0x28] sm:$0x1]
      %v850 = vld [vmem:[%s1 + $0xf] sm:$0x1]
      %v851 = vlaneseq
      %v852 = vshrl.u32 %v851, 7
      %v853 = vsub.s32 0, %v852
      %v854 = vrot.slane %v850, %v853
      %v855 = vmul.f32 %v846, %v854
      %v856 = vmul.f32 %v430, %v854
      %v857 = vmul.f32 %v848, %v854
      %v861 = vrot.slane %v855, 1
      %v862 = vrot.slane %v856, 1
      %v863 = vsel %vm518, %v861, %v862
      %v864 = vrot.slane %v857, 1
      %v865 = vsel %vm518, %v862, %v864
      %v868 = vadd.f32 %v844, %v863
      %v869 = vadd.f32 %v845, %v865
      %v870 = vld [vmem:[%s1 + $0x13] sm:$0x1]
      %v871 = vlaneseq
      %v872 = vshrl.u32 %v871, 7
      %v873 = vsub.s32 0, %v872
      %v874 = vrot.slane %v870, %v873
      %876 = vrot.lane.b32.xlu0 %v874, 8
      %v877 = vpop.permute.xlu0 %876
      %v879 = vmul.f32 %v846, %v877
      %v880 = vmul.f32 %v847, %v877
      %v881 = vmul.f32 %v430, %v877
      %v882 = vmul.f32 %v431, %v877
      %v883 = vmul.f32 %v848, %v877
      %v884 = vmul.f32 %v849, %v877
      %v891 = vrot.slane %v879, 1
      %v892 = vrot.slane %v881, 1
      %v893 = vsel %vm518, %v891, %v892
      %v894 = vrot.slane %v880, 1
      %v895 = vrot.slane %v882, 1
      %v896 = vsel %vm518, %v894, %v895
      %v897 = vrot.slane %v883, 1
      %v898 = vsel %vm518, %v892, %v897
      %v899 = vrot.slane %v884, 1
      %v900 = vsel %vm518, %v895, %v899
      %901 = vrot.lane.b32.xlu0 %v893, 120
      %v902 = vpop.permute.xlu0 %901
      %903 = vrot.lane.b32.xlu0 %v896, 120
      %v904 = vpop.permute.xlu0 %903
      %905 = vrot.lane.b32.xlu0 %v898, 120
      %v906 = vpop.permute.xlu0 %905
      %907 = vrot.lane.b32.xlu0 %v900, 120
      %v908 = vpop.permute.xlu0 %907
      %v909 = vsel %vm236, %v902, %v904
      %v910 = vsel %vm236, %v906, %v908
      %v913 = vadd.f32 %v868, %v909
      %v914 = vadd.f32 %v869, %v910
      %v915 = vld [vmem:[%s1 + $0x17] sm:$0x1]
      %v916 = vlaneseq
      %v917 = vshrl.u32 %v916, 7
      %v918 = vsub.s32 0, %v917
      %v919 = vrot.slane %v915, %v918
      %921 = vrot.lane.b32.xlu0 %v919, 16
      %v922 = vpop.permute.xlu0 %921
      %v924 = vmul.f32 %v846, %v922
      %v925 = vmul.f32 %v847, %v922
      %v926 = vmul.f32 %v430, %v922
      %v927 = vmul.f32 %v431, %v922
      %v928 = vmul.f32 %v848, %v922
      %v929 = vmul.f32 %v849, %v922
      %v936 = vrot.slane %v924, 1
      %v937 = vrot.slane %v926, 1
      %v938 = vsel %vm518, %v936, %v937
      %v939 = vrot.slane %v925, 1
      %v940 = vrot.slane %v927, 1
      %v941 = vsel %vm518, %v939, %v940
      %v942 = vrot.slane %v928, 1
      %v943 = vsel %vm518, %v937, %v942
      %v944 = vrot.slane %v929, 1
      %v945 = vsel %vm518, %v940, %v944
      %946 = vrot.lane.b32.xlu0 %v938, 112
      %v947 = vpop.permute.xlu0 %946
      %948 = vrot.lane.b32.xlu0 %v941, 112
      %v949 = vpop.permute.xlu0 %948
      %950 = vrot.lane.b32.xlu0 %v943, 112
      %v951 = vpop.permute.xlu0 %950
      %952 = vrot.lane.b32.xlu0 %v945, 112
      %v953 = vpop.permute.xlu0 %952
      %v954 = vsel %vm268, %v947, %v949
      %v955 = vsel %vm268, %v951, %v953
      %v958 = vadd.f32 %v913, %v954
      %v959 = vadd.f32 %v914, %v955
      %v960 = vld [vmem:[%s192] sm:$0xfc]
      %v961 = vld [vmem:[%s192 + $0x8] sm:$0xfc]
      %v962 = vld [vmem:[%s192 + $0x20] sm:$0x3]
      %v963 = vld [vmem:[%s192 + $0x28] sm:$0x3]
      %v964 = vld [vmem:[%s1 + $0x18] sm:$0x1]
      %v965 = vlaneseq
      %v966 = vshrl.u32 %v965, 7
      %v967 = vsub.s32 0, %v966
      %v968 = vrot.slane %v964, %v967
      %v969 = vmul.f32 %v960, %v968
      %v970 = vmul.f32 %v200, %v968
      %v971 = vmul.f32 %v962, %v968
      %vm975 = vcmask 1045504
      %v976 = vrot.slane %v969, 2
      %v977 = vrot.slane %v970, 2
      %v978 = vsel %vm975, %v976, %v977
      %v979 = vrot.slane %v971, 2
      %v980 = vsel %vm975, %v977, %v979
      %v983 = vadd.f32 %v958, %v978
      %v984 = vadd.f32 %v959, %v980
      %v985 = vld [vmem:[%s1 + $0x1c] sm:$0x1]
      %v986 = vlaneseq
      %v987 = vshrl.u32 %v986, 7
      %v988 = vsub.s32 0, %v987
      %v989 = vrot.slane %v985, %v988
      %991 = vrot.lane.b32.xlu0 %v989, 8
      %v992 = vpop.permute.xlu0 %991
      %v994 = vmul.f32 %v960, %v992
      %v995 = vmul.f32 %v961, %v992
      %v996 = vmul.f32 %v200, %v992
      %v997 = vmul.f32 %v201, %v992
      %v998 = vmul.f32 %v962, %v992
      %v999 = vmul.f32 %v963, %v992
      %v1006 = vrot.slane %v994, 2
      %v1007 = vrot.slane %v996, 2
      %v1008 = vsel %vm975, %v1006, %v1007
      %v1009 = vrot.slane %v995, 2
      %v1010 = vrot.slane %v997, 2
      %v1011 = vsel %vm975, %v1009, %v1010
      %v1012 = vrot.slane %v998, 2
      %v1013 = vsel %vm975, %v1007, %v1012
      %v1014 = vrot.slane %v999, 2
      %v1015 = vsel %vm975, %v1010, %v1014
      %1016 = vrot.lane.b32.xlu0 %v1008, 120
      %v1017 = vpop.permute.xlu0 %1016
      %1018 = vrot.lane.b32.xlu0 %v1011, 120
      %v1019 = vpop.permute.xlu0 %1018
      %1020 = vrot.lane.b32.xlu0 %v1013, 120
      %v1021 = vpop.permute.xlu0 %1020
      %1022 = vrot.lane.b32.xlu0 %v1015, 120
      %v1023 = vpop.permute.xlu0 %1022
      %v1024 = vsel %vm236, %v1017, %v1019
      %v1025 = vsel %vm236, %v1021, %v1023
      %v1028 = vadd.f32 %v983, %v1024
      %v1029 = vadd.f32 %v984, %v1025
      %v1030 = vld [vmem:[%s1 + $0x20] sm:$0x1]
      %v1031 = vlaneseq
      %v1032 = vshrl.u32 %v1031, 7
      %v1033 = vsub.s32 0, %v1032
      %v1034 = vrot.slane %v1030, %v1033
      %1036 = vrot.lane.b32.xlu0 %v1034, 16
      %v1037 = vpop.permute.xlu0 %1036
      %v1039 = vmul.f32 %v960, %v1037
      %v1040 = vmul.f32 %v961, %v1037
      %v1041 = vmul.f32 %v200, %v1037
      %v1042 = vmul.f32 %v201, %v1037
      %v1043 = vmul.f32 %v962, %v1037
      %v1044 = vmul.f32 %v963, %v1037
      %v1051 = vrot.slane %v1039, 2
      %v1052 = vrot.slane %v1041, 2
      %v1053 = vsel %vm975, %v1051, %v1052
      %v1054 = vrot.slane %v1040, 2
      %v1055 = vrot.slane %v1042, 2
      %v1056 = vsel %vm975, %v1054, %v1055
      %v1057 = vrot.slane %v1043, 2
      %v1058 = vsel %vm975, %v1052, %v1057
      %v1059 = vrot.slane %v1044, 2
      %v1060 = vsel %vm975, %v1055, %v1059
      %1061 = vrot.lane.b32.xlu0 %v1053, 112
      %v1062 = vpop.permute.xlu0 %1061
      %1063 = vrot.lane.b32.xlu0 %v1056, 112
      %v1064 = vpop.permute.xlu0 %1063
      %1065 = vrot.lane.b32.xlu0 %v1058, 112
      %v1066 = vpop.permute.xlu0 %1065
      %1067 = vrot.lane.b32.xlu0 %v1060, 112
      %v1068 = vpop.permute.xlu0 %1067
      %v1069 = vsel %vm268, %v1062, %v1064
      %v1070 = vsel %vm268, %v1066, %v1068
      %v1073 = vadd.f32 %v1028, %v1069
      %v1074 = vadd.f32 %v1029, %v1070
      %v1075 = vld [vmem:[%s275] sm:$0xfc]
      %v1076 = vld [vmem:[%s275 + $0x8] sm:$0xfc]
      %v1077 = vld [vmem:[%s275 + $0x20] sm:$0x3]
      %v1078 = vld [vmem:[%s275 + $0x28] sm:$0x3]
      %v1079 = vld [vmem:[%s1 + $0x19] sm:$0x1]
      %v1080 = vlaneseq
      %v1081 = vshrl.u32 %v1080, 7
      %v1082 = vsub.s32 0, %v1081
      %v1083 = vrot.slane %v1079, %v1082
      %v1084 = vmul.f32 %v1075, %v1083
      %v1085 = vmul.f32 %v278, %v1083
      %v1086 = vmul.f32 %v1077, %v1083
      %v1090 = vrot.slane %v1084, 2
      %v1091 = vrot.slane %v1085, 2
      %v1092 = vsel %vm975, %v1090, %v1091
      %v1093 = vrot.slane %v1086, 2
      %v1094 = vsel %vm975, %v1091, %v1093
      %v1097 = vadd.f32 %v1073, %v1092
      %v1098 = vadd.f32 %v1074, %v1094
      %v1099 = vld [vmem:[%s1 + $0x1d] sm:$0x1]
      %v1100 = vlaneseq
      %v1101 = vshrl.u32 %v1100, 7
      %v1102 = vsub.s32 0, %v1101
      %v1103 = vrot.slane %v1099, %v1102
      %1105 = vrot.lane.b32.xlu0 %v1103, 8
      %v1106 = vpop.permute.xlu0 %1105
      %v1108 = vmul.f32 %v1075, %v1106
      %v1109 = vmul.f32 %v1076, %v1106
      %v1110 = vmul.f32 %v278, %v1106
      %v1111 = vmul.f32 %v279, %v1106
      %v1112 = vmul.f32 %v1077, %v1106
      %v1113 = vmul.f32 %v1078, %v1106
      %v1120 = vrot.slane %v1108, 2
      %v1121 = vrot.slane %v1110, 2
      %v1122 = vsel %vm975, %v1120, %v1121
      %v1123 = vrot.slane %v1109, 2
      %v1124 = vrot.slane %v1111, 2
      %v1125 = vsel %vm975, %v1123, %v1124
      %v1126 = vrot.slane %v1112, 2
      %v1127 = vsel %vm975, %v1121, %v1126
      %v1128 = vrot.slane %v1113, 2
      %v1129 = vsel %vm975, %v1124, %v1128
      %1130 = vrot.lane.b32.xlu0 %v1122, 120
      %v1131 = vpop.permute.xlu0 %1130
      %1132 = vrot.lane.b32.xlu0 %v1125, 120
      %v1133 = vpop.permute.xlu0 %1132
      %1134 = vrot.lane.b32.xlu0 %v1127, 120
      %v1135 = vpop.permute.xlu0 %1134
      %1136 = vrot.lane.b32.xlu0 %v1129, 120
      %v1137 = vpop.permute.xlu0 %1136
      %v1138 = vsel %vm236, %v1131, %v1133
      %v1139 = vsel %vm236, %v1135, %v1137
      %v1142 = vadd.f32 %v1097, %v1138
      %v1143 = vadd.f32 %v1098, %v1139
      %v1144 = vld [vmem:[%s1 + $0x21] sm:$0x1]
      %v1145 = vlaneseq
      %v1146 = vshrl.u32 %v1145, 7
      %v1147 = vsub.s32 0, %v1146
      %v1148 = vrot.slane %v1144, %v1147
      %1150 = vrot.lane.b32.xlu0 %v1148, 16
      %v1151 = vpop.permute.xlu0 %1150
      %v1153 = vmul.f32 %v1075, %v1151
      %v1154 = vmul.f32 %v1076, %v1151
      %v1155 = vmul.f32 %v278, %v1151
      %v1156 = vmul.f32 %v279, %v1151
      %v1157 = vmul.f32 %v1077, %v1151
      %v1158 = vmul.f32 %v1078, %v1151
      %v1165 = vrot.slane %v1153, 2
      %v1166 = vrot.slane %v1155, 2
      %v1167 = vsel %vm975, %v1165, %v1166
      %v1168 = vrot.slane %v1154, 2
      %v1169 = vrot.slane %v1156, 2
      %v1170 = vsel %vm975, %v1168, %v1169
      %v1171 = vrot.slane %v1157, 2
      %v1172 = vsel %vm975, %v1166, %v1171
      %v1173 = vrot.slane %v1158, 2
      %v1174 = vsel %vm975, %v1169, %v1173
      %1175 = vrot.lane.b32.xlu0 %v1167, 112
      %v1176 = vpop.permute.xlu0 %1175
      %1177 = vrot.lane.b32.xlu0 %v1170, 112
      %v1178 = vpop.permute.xlu0 %1177
      %1179 = vrot.lane.b32.xlu0 %v1172, 112
      %v1180 = vpop.permute.xlu0 %1179
      %1181 = vrot.lane.b32.xlu0 %v1174, 112
      %v1182 = vpop.permute.xlu0 %1181
      %v1183 = vsel %vm268, %v1176, %v1178
      %v1184 = vsel %vm268, %v1180, %v1182
      %v1187 = vadd.f32 %v1142, %v1183
      %v1188 = vadd.f32 %v1143, %v1184
      %v1189 = vld [vmem:[%s351] sm:$0xfc]
      %v1190 = vld [vmem:[%s351 + $0x8] sm:$0xfc]
      %v1191 = vld [vmem:[%s351 + $0x20] sm:$0x3]
      %v1192 = vld [vmem:[%s351 + $0x28] sm:$0x3]
      %v1193 = vld [vmem:[%s1 + $0x1a] sm:$0x1]
      %v1194 = vlaneseq
      %v1195 = vshrl.u32 %v1194, 7
      %v1196 = vsub.s32 0, %v1195
      %v1197 = vrot.slane %v1193, %v1196
      %v1198 = vmul.f32 %v1189, %v1197
      %v1199 = vmul.f32 %v354, %v1197
      %v1200 = vmul.f32 %v1191, %v1197
      %v1204 = vrot.slane %v1198, 2
      %v1205 = vrot.slane %v1199, 2
      %v1206 = vsel %vm975, %v1204, %v1205
      %v1207 = vrot.slane %v1200, 2
      %v1208 = vsel %vm975, %v1205, %v1207
      %v1211 = vadd.f32 %v1187, %v1206
      %v1212 = vadd.f32 %v1188, %v1208
      %v1213 = vld [vmem:[%s1 + $0x1e] sm:$0x1]
      %v1214 = vlaneseq
      %v1215 = vshrl.u32 %v1214, 7
      %v1216 = vsub.s32 0, %v1215
      %v1217 = vrot.slane %v1213, %v1216
      %1219 = vrot.lane.b32.xlu0 %v1217, 8
      %v1220 = vpop.permute.xlu0 %1219
      %v1222 = vmul.f32 %v1189, %v1220
      %v1223 = vmul.f32 %v1190, %v1220
      %v1224 = vmul.f32 %v354, %v1220
      %v1225 = vmul.f32 %v355, %v1220
      %v1226 = vmul.f32 %v1191, %v1220
      %v1227 = vmul.f32 %v1192, %v1220
      %v1234 = vrot.slane %v1222, 2
      %v1235 = vrot.slane %v1224, 2
      %v1236 = vsel %vm975, %v1234, %v1235
      %v1237 = vrot.slane %v1223, 2
      %v1238 = vrot.slane %v1225, 2
      %v1239 = vsel %vm975, %v1237, %v1238
      %v1240 = vrot.slane %v1226, 2
      %v1241 = vsel %vm975, %v1235, %v1240
      %v1242 = vrot.slane %v1227, 2
      %v1243 = vsel %vm975, %v1238, %v1242
      %1244 = vrot.lane.b32.xlu0 %v1236, 120
      %v1245 = vpop.permute.xlu0 %1244
      %1246 = vrot.lane.b32.xlu0 %v1239, 120
      %v1247 = vpop.permute.xlu0 %1246
      %1248 = vrot.lane.b32.xlu0 %v1241, 120
      %v1249 = vpop.permute.xlu0 %1248
      %1250 = vrot.lane.b32.xlu0 %v1243, 120
      %v1251 = vpop.permute.xlu0 %1250
      %v1252 = vsel %vm236, %v1245, %v1247
      %v1253 = vsel %vm236, %v1249, %v1251
      %v1256 = vadd.f32 %v1211, %v1252
      %v1257 = vadd.f32 %v1212, %v1253
      %v1258 = vld [vmem:[%s1 + $0x22] sm:$0x1]
      %v1259 = vlaneseq
      %v1260 = vshrl.u32 %v1259, 7
      %v1261 = vsub.s32 0, %v1260
      %v1262 = vrot.slane %v1258, %v1261
      %1264 = vrot.lane.b32.xlu0 %v1262, 16
      %v1265 = vpop.permute.xlu0 %1264
      %v1267 = vmul.f32 %v1189, %v1265
      %v1268 = vmul.f32 %v1190, %v1265
      %v1269 = vmul.f32 %v354, %v1265
      %v1270 = vmul.f32 %v355, %v1265
      %v1271 = vmul.f32 %v1191, %v1265
      %v1272 = vmul.f32 %v1192, %v1265
      %v1279 = vrot.slane %v1267, 2
      %v1280 = vrot.slane %v1269, 2
      %v1281 = vsel %vm975, %v1279, %v1280
      %v1282 = vrot.slane %v1268, 2
      %v1283 = vrot.slane %v1270, 2
      %v1284 = vsel %vm975, %v1282, %v1283
      %v1285 = vrot.slane %v1271, 2
      %v1286 = vsel %vm975, %v1280, %v1285
      %v1287 = vrot.slane %v1272, 2
      %v1288 = vsel %vm975, %v1283, %v1287
      %1289 = vrot.lane.b32.xlu0 %v1281, 112
      %v1290 = vpop.permute.xlu0 %1289
      %1291 = vrot.lane.b32.xlu0 %v1284, 112
      %v1292 = vpop.permute.xlu0 %1291
      %1293 = vrot.lane.b32.xlu0 %v1286, 112
      %v1294 = vpop.permute.xlu0 %1293
      %1295 = vrot.lane.b32.xlu0 %v1288, 112
      %v1296 = vpop.permute.xlu0 %1295
      %v1297 = vsel %vm268, %v1290, %v1292
      %v1298 = vsel %vm268, %v1294, %v1296
      %v1301 = vadd.f32 %v1256, %v1297
      %v1302 = vadd.f32 %v1257, %v1298
      %v1303 = vld [vmem:[%s427] sm:$0xfc]
      %v1304 = vld [vmem:[%s427 + $0x8] sm:$0xfc]
      %v1305 = vld [vmem:[%s427 + $0x20] sm:$0x3]
      %v1306 = vld [vmem:[%s427 + $0x28] sm:$0x3]
      %v1307 = vld [vmem:[%s1 + $0x1b] sm:$0x1]
      %v1308 = vlaneseq
      %v1309 = vshrl.u32 %v1308, 7
      %v1310 = vsub.s32 0, %v1309
      %v1311 = vrot.slane %v1307, %v1310
      %v1312 = vmul.f32 %v1303, %v1311
      %v1313 = vmul.f32 %v430, %v1311
      %v1314 = vmul.f32 %v1305, %v1311
      %v1318 = vrot.slane %v1312, 2
      %v1319 = vrot.slane %v1313, 2
      %v1320 = vsel %vm975, %v1318, %v1319
      %v1321 = vrot.slane %v1314, 2
      %v1322 = vsel %vm975, %v1319, %v1321
      %v1325 = vadd.f32 %v1301, %v1320
      %v1326 = vadd.f32 %v1302, %v1322
      %v1327 = vld [vmem:[%s1 + $0x1f] sm:$0x1]
      %v1328 = vlaneseq
      %v1329 = vshrl.u32 %v1328, 7
      %v1330 = vsub.s32 0, %v1329
      %v1331 = vrot.slane %v1327, %v1330
      %1333 = vrot.lane.b32.xlu0 %v1331, 8
      %v1334 = vpop.permute.xlu0 %1333
      %v1336 = vmul.f32 %v1303, %v1334
      %v1337 = vmul.f32 %v1304, %v1334
      %v1338 = vmul.f32 %v430, %v1334
      %v1339 = vmul.f32 %v431, %v1334
      %v1340 = vmul.f32 %v1305, %v1334
      %v1341 = vmul.f32 %v1306, %v1334
      %v1348 = vrot.slane %v1336, 2
      %v1349 = vrot.slane %v1338, 2
      %v1350 = vsel %vm975, %v1348, %v1349
      %v1351 = vrot.slane %v1337, 2
      %v1352 = vrot.slane %v1339, 2
      %v1353 = vsel %vm975, %v1351, %v1352
      %v1354 = vrot.slane %v1340, 2
      %v1355 = vsel %vm975, %v1349, %v1354
      %v1356 = vrot.slane %v1341, 2
      %v1357 = vsel %vm975, %v1352, %v1356
      %1358 = vrot.lane.b32.xlu0 %v1350, 120
      %v1359 = vpop.permute.xlu0 %1358
      %1360 = vrot.lane.b32.xlu0 %v1353, 120
      %v1361 = vpop.permute.xlu0 %1360
      %1362 = vrot.lane.b32.xlu0 %v1355, 120
      %v1363 = vpop.permute.xlu0 %1362
      %1364 = vrot.lane.b32.xlu0 %v1357, 120
      %v1365 = vpop.permute.xlu0 %1364
      %v1366 = vsel %vm236, %v1359, %v1361
      %v1367 = vsel %vm236, %v1363, %v1365
      %v1370 = vadd.f32 %v1325, %v1366
      %v1371 = vadd.f32 %v1326, %v1367
      %v1372 = vld [vmem:[%s1 + $0x23] sm:$0x1]
      %v1373 = vlaneseq
      %v1374 = vshrl.u32 %v1373, 7
      %v1375 = vsub.s32 0, %v1374
      %v1376 = vrot.slane %v1372, %v1375
      %1378 = vrot.lane.b32.xlu0 %v1376, 16
      %v1379 = vpop.permute.xlu0 %1378
      %v1381 = vmul.f32 %v1303, %v1379
      %v1382 = vmul.f32 %v1304, %v1379
      %v1383 = vmul.f32 %v430, %v1379
      %v1384 = vmul.f32 %v431, %v1379
      %v1385 = vmul.f32 %v1305, %v1379
      %v1386 = vmul.f32 %v1306, %v1379
      %v1393 = vrot.slane %v1381, 2
      %v1394 = vrot.slane %v1383, 2
      %v1395 = vsel %vm975, %v1393, %v1394
      %v1396 = vrot.slane %v1382, 2
      %v1397 = vrot.slane %v1384, 2
      %v1398 = vsel %vm975, %v1396, %v1397
      %v1399 = vrot.slane %v1385, 2
      %v1400 = vsel %vm975, %v1394, %v1399
      %v1401 = vrot.slane %v1386, 2
      %v1402 = vsel %vm975, %v1397, %v1401
      %1403 = vrot.lane.b32.xlu0 %v1395, 112
      %v1404 = vpop.permute.xlu0 %1403
      %1405 = vrot.lane.b32.xlu0 %v1398, 112
      %v1406 = vpop.permute.xlu0 %1405
      %1407 = vrot.lane.b32.xlu0 %v1400, 112
      %v1408 = vpop.permute.xlu0 %1407
      %1409 = vrot.lane.b32.xlu0 %v1402, 112
      %v1410 = vpop.permute.xlu0 %1409
      %v1411 = vsel %vm268, %v1404, %v1406
      %v1412 = vsel %vm268, %v1408, %v1410
      %v1415 = vadd.f32 %v1370, %v1411
      %v1416 = vadd.f32 %v1371, %v1412
      %v1417 = vld [vmem:[%s2] sm:$0x1]
      %v1418 = vld [vmem:[%s3] sm:$0x1]
      %v1421 = vrot.slane %v1415, 1
      %v1422 = vrot.slane %v1416, 1
      %v1423 = vsel %vm518, %v1421, %v1422
      %v1426 = vmax.f32 %v1415, %v1423
      %v1427 = vmax.f32 %v1416, %v1422
      %1430 = vrot.lane.b32.xlu0 %v1426, 120
      %v1431 = vpop.permute.xlu0 %1430
      %1432 = vrot.lane.b32.xlu0 %v1427, 120
      %v1433 = vpop.permute.xlu0 %1432
      %v1436 = vmax.f32 %v1426, %v1431
      %v1437 = vmax.f32 %v1427, %v1433
      %v1439 = vlaneseq
      %v1440 = vshrl.u32 %v1439, 7
      %v1441 = vsub.s32 0, %v1440
      %v1442 = vrot.slane %v1417, %v1441
      %v1444 = vmul.f32 %v1436, %v1442
      %v1445 = vmul.f32 %v1437, %v1442
      %v1447 = vlaneseq
      %v1448 = vshrl.u32 %v1447, 7
      %v1449 = vsub.s32 0, %v1448
      %v1450 = vrot.slane %v1418, %v1449
      %v1452 = vadd.f32 %v1444, %v1450
      %v1453 = vadd.f32 %v1445, %v1450
      %v1454 = vmax.f32 %v1452, 0.0
      %v1455 = vmax.f32 %v1453, 0.0
      %1456 = vst.msk [vmem:[%s197] sm:$0xff] %vm236, %v1454
      %vm1457 = vcmask 980992
      %1458 = vst.msk [vmem:[%s197 + $0x8] sm:$0x7f] %vm1457, %v1455
      %p1459 = scmp.lt.s32.totalorder %s15, 1
      %s1460 = scalar_select %p1459, %s15, 1
      %s1461 = smul.addr %s1460, 2
      %s1462 = smul.addr %s1461, 8
      %s1463 = scalar_lea.vmem %s4, %s1462
      // Predicated region
      $region37: #{enc_block_forward.1} parent=35 // pred_check
        %p1464 = pneg %p122
      $region38: #{enc_block_forward.1} parent=35 // pred_check_branch
        %1466 = sbr.rel (%p1464) target = $region40
      $region39: #{enc_block_forward.1} parent=35 // pred_region
        _
      $region40: #{enc_block_forward.1} parent=35 // pred_fallthru
        _
    $region36: #{enc_block_forward.1} parent=5 // pred_fallthru
      _
    %p1467 = scmp.le.s32.totalorder 2, %s10
    // Predicated region
    $region41: #{enc_block_forward.1} parent=5 // pred_check
      %p1468 = pneg %p1467
    $region42: #{enc_block_forward.1} parent=5 // pred_check_branch
      %1470 = sbr.rel (%p1468) target = $region44
    $region43: #{enc_block_forward.1} parent=5 // pred_region
      %s1471 = ssub.s32 %s10, 2
      // Predicated region
      $region45: #{enc_block_forward.1} parent=43 // pred_check
        %p1472 = pneg %p128
      $region46: #{enc_block_forward.1} parent=43 // pred_check_branch
        %1474 = sbr.rel (%p1472) target = $region48
      $region47: #{enc_block_forward.1} parent=43 // pred_region
        %p1475 = scmp.lt.s32.totalorder %s16, 1
        %s1476 = scalar_select %p1475, %s16, 1
        %s1477 = smul.addr %s1476, 2
        %s1478 = smul.addr %s1477, 8
        %s1479 = scalar_lea.vmem %s4, %s1478
      $region48: #{enc_block_forward.1} parent=43 // pred_fallthru
        _
    $region44: #{enc_block_forward.1} parent=5 // pred_fallthru
      _
  $region6: #{enc_block_forward.1} parent=0 // loop_footer
    %s14 = sadd.s32 1, %s10
  $region7: #{enc_block_forward.1} parent=0 // loop_footer_branch
    %9 = sbr.rel target = $region3
  $region8: #{enc_block_forward.1} parent=0 // loop_exit
    _

</llo_original>
